<compile_context>
chip_gen: v7x
topology: tpu7x:2x2x1
jax: 0.10.0
libtpu: 0.0.40
codegen_flags: <defaults>
</compile_context>

<pallas_src>
import jax
import jax.numpy as jnp
from jax import lax
from jax.experimental import pallas as pl
from jax.experimental.pallas import tpu as pltpu

DIM = 32            # fingerprint / hidden dim
N_MED = 8           # number of molecules == rows of avg_projection
MOL_SIZE = 8        # atoms per molecule (all molecular_sizes equal)
N_NODES = N_MED * MOL_SIZE
N_FP = 20           # N_fingerprint (padding idx == N_FP)
N_DIAG = 16
N_PRO = 12
EPS = 0.3           # Fagcn_main eps
LAYER_NUM = 2       # Fagcn_main layer_num
FP_PAD = 128        # one-hot lane padding for the embedding gather-as-matmul
BATCH = 8           # graph instances per pallas_call (grid axis)

# per-instance slab rows (128 lanes, bf16); every sub-block is lane-0 / 8-row aligned
X_FP = 0            # [0,64)    one-hot fingerprints, lanes [0,128)
X_ADJ = 64          # [64,128)  deg-normalized adjacency, lanes [0,64)
X_MED = 128         # [128,136) [med2diag | med2pro | 1 | 0...], lanes [0,32)
X_EHR = 136         # [136,144) ehr_adj, lanes [0,8)
X_POOL = 144        # [144,152) avg_projection @ sum_pool, lanes [0,64)
X_ROWS = 152

# shared weight slab rows (32 lanes, bf16)
W_EMB = 0           # [0,128)   padded embedding table
W_DP = 128          # [128,160) dp_eff (diag/pro/vc_b folded)
W_FCSEL = 160       # [160,192) fc_selector weight (in,out)
W_CATTN = 192       # [192,224) context_attn weight (in,out)
W_GATE = 224        # [224,228) gate rows [wd_0, wd_1, ws_0, ws_1]
W_ROWS = 232

# shared f32 bias slab rows (32 lanes)
P_FCSEL_B = 0
P_CATTN_B = 1
P_GATE_B = 2        # cols [0, LAYER_NUM)
P_ROWS = 8


def mgnn_kernel(x_ref, w_ref, p_ref, out_ref):
    f32 = jnp.float32

    # ---- per-instance slab (bf16; lane-0-aligned, 8-row-aligned static views) ----
    fp = x_ref[X_FP:X_FP + N_NODES, :]                                    # (64,128) bf16
    adj = x_ref[X_ADJ:X_ADJ + N_NODES, 0:N_NODES].astype(f32)             # (64,64)
    med_dp = x_ref[X_MED:X_MED + N_MED, 0:DIM]                            # (8,32) bf16
    ehr = x_ref[X_EHR:X_EHR + N_MED, 0:N_MED].astype(f32)                 # (8,8)
    pool_avg = x_ref[X_POOL:X_POOL + N_MED, 0:N_NODES].astype(f32)        # (8,64)

    # ---- shared weight slab (bf16) ----
    emb_tbl = w_ref[W_EMB:W_EMB + FP_PAD, :]                              # (128,32) bf16
    dp_eff = w_ref[W_DP:W_DP + DIM, :]                                    # (32,32) bf16
    fcsel_w = w_ref[W_FCSEL:W_FCSEL + DIM, :].astype(f32)                 # (32,32)
    cattn_w = w_ref[W_CATTN:W_CATTN + DIM, :].astype(f32)                 # (32,32)
    gmat = w_ref[W_GATE:W_GATE + 2 * LAYER_NUM, :].astype(f32)            # (4,32)

    # ---- shared f32 biases ----
    fcsel_b = p_ref[P_FCSEL_B:P_FCSEL_B + 1, :]                           # (1,32)
    cattn_b = p_ref[P_CATTN_B:P_CATTN_B + 1, :]                           # (1,32)
    gate_b = p_ref[P_GATE_B:P_GATE_B + 1, :]                              # (1,32)

    # ---- fingerprint embedding: lane-dense one-hot gather on the MXU ----
    h = jnp.dot(fp, emb_tbl, preferred_element_type=f32)                  # (64,32) f32

    # ---- update_recemb (diag/pro tables + viewcat weight/bias folded into dp_eff on host) ----
    med_rec = jnp.dot(med_dp, dp_eff, preferred_element_type=f32)         # (8,32)
    aug = jnp.dot(ehr, med_rec, preferred_element_type=f32)               # (8,32)
    sel = jnp.tanh(jnp.dot(med_rec, fcsel_w, preferred_element_type=f32) + fcsel_b)
    context = med_rec + sel * aug                                         # (8,32)

    # ---- context attention at med granularity (linear commutes with row-repeat), then
    #      replicate to nodes with an iota-built (64,8) replication operand (no reshape) ----
    attn_med = jnp.tanh(jnp.dot(context, cattn_w, preferred_element_type=f32) + cattn_b)
    nrow = lax.broadcasted_iota(jnp.int32, (N_NODES, N_MED), 0)
    mcol = lax.broadcasted_iota(jnp.int32, (N_NODES, N_MED), 1)
    repmat = ((nrow >= mcol * MOL_SIZE) & (nrow < (mcol + 1) * MOL_SIZE)).astype(f32)
    attn = jnp.dot(repmat, attn_med, preferred_element_type=f32)          # (64,32)

    # identity mask for the sublane->lane "transpose" of the gate src column (hoisted)
    ri = lax.broadcasted_iota(jnp.int32, (N_NODES, N_NODES), 0)
    ci = lax.broadcasted_iota(jnp.int32, (N_NODES, N_NODES), 1)
    eye = (ri == ci).astype(f32)                                          # (64,64)

    # ---- Fagcn_main: LAYER_NUM dense FALayers (eval mode, dropout = identity) ----
    for l in range(LAYER_NUM):
        # fused gate matmul: one MXU op yields both the dst (col l) and src (col L+l) terms
        ab = lax.dot_general(h, gmat, (((1,), (1,)), ((), ())),
                             preferred_element_type=f32)                  # (64, 2L)
        a_col = ab[:, l:l + 1]                                            # (64,1)
        b_col = ab[:, LAYER_NUM + l:LAYER_NUM + l + 1]                    # (64,1)
        # lane-transpose of b_col via iota-mask * broadcast + sublane reduce (VPU/XLU only)
        b_row = jnp.sum(eye * b_col, axis=0, keepdims=True)               # (1,64)
        gate = jnp.tanh(a_col + b_row + gate_b[0:1, l:l + 1])             # (64,64)
        e = adj * gate
        mmsg = jnp.dot(e, h, preferred_element_type=f32)                  # (64,32)
        h = jnp.maximum(EPS * h + attn * mmsg, 0.0)

    # ---- fused molecular sum-pool + avg_projection ----
    out_ref[...] = jnp.dot(pool_avg, h, preferred_element_type=f32)       # (8,32)


def mgnn_forward(xslab, wslab, pslab):
    """Batched forward over packed slabs. Returns (mpnn_emb[B, N_MED, DIM], 0)."""
    B = xslab.shape[0]
    flops_per = 2 * (
        N_NODES * FP_PAD * DIM
        + 3 * N_MED * DIM * DIM
        + N_MED * N_MED * DIM
        + N_NODES * N_MED * DIM
        + LAYER_NUM * (N_NODES * DIM * 2 * LAYER_NUM
                       + N_NODES * N_NODES * DIM
                       + 4 * N_NODES * N_NODES)
        + N_MED * N_NODES * DIM)
    trans_per = LAYER_NUM * N_NODES * N_NODES + 2 * N_MED * DIM
    bytes_per = X_ROWS * 128 * 2 + N_MED * DIM * 4
    cost = pl.CostEstimate(
        flops=B * flops_per,
        transcendentals=B * trans_per,
        bytes_accessed=B * bytes_per + W_ROWS * DIM * 2 + P_ROWS * DIM * 4)

    grid_spec = pltpu.PrefetchScalarGridSpec(
        num_scalar_prefetch=0,
        grid=(B,),
        in_specs=[
            pl.BlockSpec((None, X_ROWS, 128), lambda b: (b, 0, 0)),   # per-instance slab
            pl.BlockSpec((W_ROWS, DIM), lambda b: (0, 0)),            # shared weights (DMA'd once)
            pl.BlockSpec((P_ROWS, DIM), lambda b: (0, 0)),            # shared f32 biases
        ],
        out_specs=pl.BlockSpec((None, N_MED, DIM), lambda b: (b, 0, 0)),
    )
    out = pl.pallas_call(
        mgnn_kernel,
        out_shape=jax.ShapeDtypeStruct((B, N_MED, DIM), jnp.float32),
        grid_spec=grid_spec,
        compiler_params=pltpu.CompilerParams(dimension_semantics=("parallel",)),
        cost_estimate=cost,
    )(xslab, wslab, pslab)
    return out, 0


# ----------------------------- host-side construction / packing -----------------------------

def _xavier(k, out_dim, in_dim, gain):
    std = gain * (2.0 / (in_dim + out_dim)) ** 0.5
    return std * jax.random.normal(k, (out_dim, in_dim), jnp.float32)


def build_weights(key):
    f32 = jnp.float32
    ks = jax.random.split(key, 12)
    embed_tbl = 0.3 * jax.random.normal(ks[0], (N_FP + 1, DIM), f32)
    embed_tbl = embed_tbl.at[N_FP, :].set(0.0)                     # padding_idx row
    diag_tbl = 0.3 * jax.random.normal(ks[1], (N_DIAG, DIM), f32)
    pro_tbl = 0.3 * jax.random.normal(ks[2], (N_PRO, DIM), f32)

    vc_w = _xavier(ks[3], DIM, 2 * DIM, 1.0)                       # viewcat Linear(2*dim, dim)
    vc_w1 = vc_w[:, :DIM].T                                        # (in, out) diag view
    vc_w2 = vc_w[:, DIM:].T                                        # (in, out) pro view
    vc_b = 0.1 * jax.random.normal(ks[4], (DIM,), f32)

    fcsel_w = _xavier(ks[5], DIM, DIM, 1.0).T
    fcsel_b = 0.1 * jax.random.normal(ks[6], (DIM,), f32)

    cattn_w = _xavier(ks[7], DIM, DIM, 1.414).T
    cattn_b = 0.1 * jax.random.normal(ks[8], (DIM,), f32)

    gate_w = _xavier(ks[9], LAYER_NUM, 2 * DIM, 1.414)             # row l = [wd_l | ws_l]
    gate_b = 0.1 * jax.random.normal(ks[10], (LAYER_NUM,), f32)

    return dict(embed_tbl=embed_tbl, diag_tbl=diag_tbl, pro_tbl=pro_tbl,
                vc_w1=vc_w1, vc_w2=vc_w2, vc_b=vc_b, fcsel_w=fcsel_w, fcsel_b=fcsel_b,
                cattn_w=cattn_w, cattn_b=cattn_b, gate_w=gate_w, gate_b=gate_b)


def build_instance(key):
    f32 = jnp.float32
    ks = jax.random.split(key, 6)
    fingerprints = jax.random.randint(ks[0], (N_NODES,), 0, N_FP)

    med2diag = jax.random.bernoulli(ks[1], 0.3, (N_MED, N_DIAG)).astype(f32)
    med2pro = jax.random.bernoulli(ks[2], 0.3, (N_MED, N_PRO)).astype(f32)
    ea = jax.random.bernoulli(ks[3], 0.3, (N_MED, N_MED))
    ehr_adj = jnp.logical_or(ea, ea.T).astype(f32) * (1.0 - jnp.eye(N_MED, dtype=f32))

    # block-diagonal, symmetric, self-loop-free molecular adjacency + deg^-0.5 norms
    node_mol = jnp.arange(N_NODES) // MOL_SIZE
    block = (node_mol[:, None] == node_mol[None, :]).astype(f32)
    a = jax.random.bernoulli(ks[4], 0.5, (N_NODES, N_NODES))
    a = jnp.logical_or(a, a.T).astype(f32)
    adj = a * block * (1.0 - jnp.eye(N_NODES, dtype=f32))
    deg = jnp.maximum(adj.sum(axis=1), 1.0)
    dn = deg ** -0.5
    adj_dd = adj * dn[:, None] * dn[None, :]

    pool = (jnp.arange(N_MED)[:, None] == node_mol[None, :]).astype(f32)  # (8,64) sum-pool
    ap = jax.random.uniform(ks[5], (N_MED, N_MED), f32) + 0.1
    avg_proj = ap / ap.sum(axis=1, keepdims=True)

    return dict(fingerprints=fingerprints, med2diag=med2diag, med2pro=med2pro,
                ehr_adj=ehr_adj, adj_dd=adj_dd, pool=pool, avg_proj=avg_proj)


def pack_weights(w):
    """Constant-fold weight-only chains, pack into a bf16 weight slab + f32 bias slab."""
    f32 = jnp.float32
    hp = "highest"   # one-time host folding at full precision
    emb_pad = jnp.zeros((FP_PAD, DIM), f32).at[:N_FP + 1].set(w["embed_tbl"])
    diag_eff = jnp.dot(w["diag_tbl"], w["vc_w1"], precision=hp)            # (16,32)
    pro_eff = jnp.dot(w["pro_tbl"], w["vc_w2"], precision=hp)              # (12,32)
    dp_eff = jnp.zeros((DIM, DIM), f32)
    dp_eff = dp_eff.at[:N_DIAG].set(diag_eff)
    dp_eff = dp_eff.at[N_DIAG:N_DIAG + N_PRO].set(pro_eff)
    dp_eff = dp_eff.at[N_DIAG + N_PRO].set(w["vc_b"])                      # bias row (ones column)
    gate_rows = jnp.concatenate([w["gate_w"][:, :DIM], w["gate_w"][:, DIM:]], axis=0)  # (2L,32)

    wslab = jnp.zeros((W_ROWS, DIM), f32)
    wslab = wslab.at[W_EMB:W_EMB + FP_PAD].set(emb_pad)
    wslab = wslab.at[W_DP:W_DP + DIM].set(dp_eff)
    wslab = wslab.at[W_FCSEL:W_FCSEL + DIM].set(w["fcsel_w"])
    wslab = wslab.at[W_CATTN:W_CATTN + DIM].set(w["cattn_w"])
    wslab = wslab.at[W_GATE:W_GATE + 2 * LAYER_NUM].set(gate_rows)

    pslab = jnp.zeros((P_ROWS, DIM), f32)
    pslab = pslab.at[P_FCSEL_B].set(w["fcsel_b"])
    pslab = pslab.at[P_CATTN_B].set(w["cattn_b"])
    pslab = pslab.at[P_GATE_B, :LAYER_NUM].set(w["gate_b"])
    return wslab.astype(jnp.bfloat16), pslab


def pack_instance(inst):
    """Pack one graph instance into the (X_ROWS,128) bf16 lane-0-aligned slab."""
    f32 = jnp.float32
    hp = "highest"
    fp_onehot = jax.nn.one_hot(inst["fingerprints"], FP_PAD, dtype=f32)     # (64,128)
    pool_avg = jnp.dot(inst["avg_proj"], inst["pool"], precision=hp)        # (8,64)

    x = jnp.zeros((X_ROWS, 128), f32)
    x = x.at[X_FP:X_FP + N_NODES, :].set(fp_onehot)
    x = x.at[X_ADJ:X_ADJ + N_NODES, :N_NODES].set(inst["adj_dd"])
    x = x.at[X_MED:X_MED + N_MED, :N_DIAG].set(inst["med2diag"])
    x = x.at[X_MED:X_MED + N_MED, N_DIAG:N_DIAG + N_PRO].set(inst["med2pro"])
    x = x.at[X_MED:X_MED + N_MED, N_DIAG + N_PRO].set(1.0)                  # ones col (vc_b)
    x = x.at[X_EHR:X_EHR + N_MED, :N_MED].set(inst["ehr_adj"])
    x = x.at[X_POOL:X_POOL + N_MED, :N_NODES].set(pool_avg)
    return x.astype(jnp.bfloat16)


def reference_forward(w, inst):
    """Pure-JAX reference with the ORIGINAL (unfused) math, default matmul precision."""
    h = w["embed_tbl"][inst["fingerprints"]]                                # embedding gather
    med_diag = inst["med2diag"] @ w["diag_tbl"]
    med_pro = inst["med2pro"] @ w["pro_tbl"]
    med_rec = med_diag @ w["vc_w1"] + med_pro @ w["vc_w2"] + w["vc_b"][None, :]
    aug = inst["ehr_adj"] @ med_rec
    sel = jnp.tanh(med_rec @ w["fcsel_w"] + w["fcsel_b"][None, :])
    context = med_rec + sel * aug
    ctx_nodes = jnp.repeat(context, MOL_SIZE, axis=0)                       # repeat(1,mol).reshape
    attn = jnp.tanh(ctx_nodes @ w["cattn_w"] + w["cattn_b"][None, :])
    for l in range(LAYER_NUM):
        wd = w["gate_w"][l, :DIM]
        ws = w["gate_w"][l, DIM:]
        a = h @ wd
        b = h @ ws
        gate = jnp.tanh(a[:, None] + b[None, :] + w["gate_b"][l])
        e = inst["adj_dd"] * gate
        h = jnp.maximum(EPS * h + attn * (e @ h), 0.0)
    mol = inst["pool"] @ h
    return inst["avg_proj"] @ mol


if __name__ == "__main__":
    key = jax.random.PRNGKey(0)
    wkey, ikey = jax.random.split(key)
    wts = build_weights(wkey)
    inst_keys = jax.random.split(ikey, BATCH)
    insts = [build_instance(k) for k in inst_keys]

    wslab, pslab = pack_weights(wts)
    xslab = jnp.stack([pack_instance(i) for i in insts])          # (B, 152, 128) bf16

    mpnn_emb, zero = mgnn_forward(xslab, wslab, pslab)
    mpnn_emb = jax.block_until_ready(mpnn_emb)

    ref = jnp.stack([reference_forward(wts, i) for i in insts])   # (B, 8, 32)

    assert mpnn_emb.shape == (BATCH, N_MED, DIM) and mpnn_emb.dtype == jnp.float32
    assert zero == 0
    assert bool(jnp.all(jnp.isfinite(mpnn_emb)))
    # default single-pass bf16 MXU precision + host constant folding + bf16 operand slabs
    # => small rounding differences vs. the f32-gather reference
    max_err = float(jnp.max(jnp.abs(mpnn_emb - ref)))
    if max_err > 2e-2:
        raise AssertionError(f"kernel/reference mismatch, max abs err = {max_err}")
    print("KERNEL_OK")
</pallas_src>

<mosaic_0001>
module attributes {stable_mosaic.version = 11 : i64} {
  func.func @mgnn_kernel(%arg0: i32, %arg1: memref<1x152x128xbf16, #tpu.memory_space<vmem>>, %arg2: memref<232x32xbf16, #tpu.memory_space<vmem>>, %arg3: memref<8x32xf32, #tpu.memory_space<vmem>>, %arg4: memref<1x8x32xf32, #tpu.memory_space<vmem>>) attributes {dimension_semantics = [#tpu.dimension_semantics<parallel>], iteration_bounds = array<i64: 8>, scalar_prefetch = 0 : i64, scratch_operands = 0 : i64, tpu.core_type = #tpu.core_type<tc>, window_params = [{transform_indices = @transform_0, window_bounds = array<i64: 1, 152, 128>}, {pipeline_mode = #tpu.pipeline_mode<synchronous>, transform_indices = @transform_1, window_bounds = array<i64: 232, 32>}, {pipeline_mode = #tpu.pipeline_mode<synchronous>, transform_indices = @transform_2, window_bounds = array<i64: 8, 32>}, {transform_indices = @transform_3, window_bounds = array<i64: 1, 8, 32>}]} {
    %c0 = arith.constant 0 : index
    %c0_0 = arith.constant 0 : index
    %c0_1 = arith.constant 0 : index
    %0 = vector.load %arg1[%c0, %c0_0, %c0_1] : memref<1x152x128xbf16, #tpu.memory_space<vmem>>, vector<1x64x128xbf16>
    %1 = vector.shape_cast %0 : vector<1x64x128xbf16> to vector<64x128xbf16>
    %c0_2 = arith.constant 0 : index
    %c64 = arith.constant 64 : index
    %c0_3 = arith.constant 0 : index
    %2 = vector.load %arg1[%c0_2, %c64, %c0_3] : memref<1x152x128xbf16, #tpu.memory_space<vmem>>, vector<1x64x64xbf16>
    %3 = vector.shape_cast %2 : vector<1x64x64xbf16> to vector<64x64xbf16>
    %4 = arith.extf %3 : vector<64x64xbf16> to vector<64x64xf32>
    %c0_4 = arith.constant 0 : index
    %c128 = arith.constant 128 : index
    %c0_5 = arith.constant 0 : index
    %5 = vector.load %arg1[%c0_4, %c128, %c0_5] : memref<1x152x128xbf16, #tpu.memory_space<vmem>>, vector<1x8x32xbf16>
    %6 = vector.shape_cast %5 : vector<1x8x32xbf16> to vector<8x32xbf16>
    %c0_6 = arith.constant 0 : index
    %c136 = arith.constant 136 : index
    %c0_7 = arith.constant 0 : index
    %7 = vector.load %arg1[%c0_6, %c136, %c0_7] : memref<1x152x128xbf16, #tpu.memory_space<vmem>>, vector<1x8x8xbf16>
    %8 = vector.shape_cast %7 : vector<1x8x8xbf16> to vector<8x8xbf16>
    %9 = arith.extf %8 : vector<8x8xbf16> to vector<8x8xf32>
    %c0_8 = arith.constant 0 : index
    %c144 = arith.constant 144 : index
    %c0_9 = arith.constant 0 : index
    %10 = vector.load %arg1[%c0_8, %c144, %c0_9] : memref<1x152x128xbf16, #tpu.memory_space<vmem>>, vector<1x8x64xbf16>
    %11 = vector.shape_cast %10 : vector<1x8x64xbf16> to vector<8x64xbf16>
    %12 = arith.extf %11 : vector<8x64xbf16> to vector<8x64xf32>
    %c0_10 = arith.constant 0 : index
    %c0_11 = arith.constant 0 : index
    %13 = vector.load %arg2[%c0_10, %c0_11] : memref<232x32xbf16, #tpu.memory_space<vmem>>, vector<128x32xbf16>
    %c128_12 = arith.constant 128 : index
    %c0_13 = arith.constant 0 : index
    %14 = vector.load %arg2[%c128_12, %c0_13] : memref<232x32xbf16, #tpu.memory_space<vmem>>, vector<32x32xbf16>
    %c160 = arith.constant 160 : index
    %c0_14 = arith.constant 0 : index
    %15 = vector.load %arg2[%c160, %c0_14] : memref<232x32xbf16, #tpu.memory_space<vmem>>, vector<32x32xbf16>
    %16 = arith.extf %15 : vector<32x32xbf16> to vector<32x32xf32>
    %c192 = arith.constant 192 : index
    %c0_15 = arith.constant 0 : index
    %17 = vector.load %arg2[%c192, %c0_15] : memref<232x32xbf16, #tpu.memory_space<vmem>>, vector<32x32xbf16>
    %18 = arith.extf %17 : vector<32x32xbf16> to vector<32x32xf32>
    %c224 = arith.constant 224 : index
    %c0_16 = arith.constant 0 : index
    %19 = vector.load %arg2[%c224, %c0_16] : memref<232x32xbf16, #tpu.memory_space<vmem>>, vector<4x32xbf16>
    %20 = arith.extf %19 : vector<4x32xbf16> to vector<4x32xf32>
    %c0_17 = arith.constant 0 : index
    %c0_18 = arith.constant 0 : index
    %21 = vector.load %arg3[%c0_17, %c0_18] : memref<8x32xf32, #tpu.memory_space<vmem>>, vector<1x32xf32>
    %c1 = arith.constant 1 : index
    %c0_19 = arith.constant 0 : index
    %22 = vector.load %arg3[%c1, %c0_19] : memref<8x32xf32, #tpu.memory_space<vmem>>, vector<1x32xf32>
    %c2 = arith.constant 2 : index
    %c0_20 = arith.constant 0 : index
    %23 = vector.load %arg3[%c2, %c0_20] : memref<8x32xf32, #tpu.memory_space<vmem>>, vector<1x32xf32>
    %cst = arith.constant dense<0.000000e+00> : vector<64x32xf32>
    %24 = tpu.matmul %1, %13, %cst {dimension_numbers = #tpu.dot_dimension_numbers<[1], [0], [0], [1], [0, 0, 1, 1], [], []>} : vector<64x128xbf16>, vector<128x32xbf16>, vector<64x32xf32> -> vector<64x32xf32>
    %cst_21 = arith.constant dense<0.000000e+00> : vector<8x32xf32>
    %25 = tpu.matmul %6, %14, %cst_21 {dimension_numbers = #tpu.dot_dimension_numbers<[1], [0], [0], [1], [0, 0, 1, 1], [], []>} : vector<8x32xbf16>, vector<32x32xbf16>, vector<8x32xf32> -> vector<8x32xf32>
    %cst_22 = arith.constant dense<0.000000e+00> : vector<8x32xf32>
    %26 = tpu.matmul %9, %25, %cst_22 {dimension_numbers = #tpu.dot_dimension_numbers<[1], [0], [0], [1], [0, 0, 1, 1], [], []>} : vector<8x8xf32>, vector<8x32xf32>, vector<8x32xf32> -> vector<8x32xf32>
    %cst_23 = arith.constant dense<0.000000e+00> : vector<8x32xf32>
    %27 = tpu.matmul %25, %16, %cst_23 {dimension_numbers = #tpu.dot_dimension_numbers<[1], [0], [0], [1], [0, 0, 1, 1], [], []>} : vector<8x32xf32>, vector<32x32xf32>, vector<8x32xf32> -> vector<8x32xf32>
    %28 = vector.broadcast %21 : vector<1x32xf32> to vector<8x32xf32>
    %29 = arith.addf %27, %28 : vector<8x32xf32>
    %30 = math.tanh %29 : vector<8x32xf32>
    %31 = arith.mulf %30, %26 : vector<8x32xf32>
    %32 = arith.addf %25, %31 : vector<8x32xf32>
    %cst_24 = arith.constant dense<0.000000e+00> : vector<8x32xf32>
    %33 = tpu.matmul %32, %18, %cst_24 {dimension_numbers = #tpu.dot_dimension_numbers<[1], [0], [0], [1], [0, 0, 1, 1], [], []>} : vector<8x32xf32>, vector<32x32xf32>, vector<8x32xf32> -> vector<8x32xf32>
    %34 = vector.broadcast %22 : vector<1x32xf32> to vector<8x32xf32>
    %35 = arith.addf %33, %34 : vector<8x32xf32>
    %36 = math.tanh %35 : vector<8x32xf32>
    %37 = tpu.iota {dimensions = array<i32: 0>} : vector<64x8xi32>
    %38 = tpu.iota {dimensions = array<i32: 1>} : vector<64x8xi32>
    %c8_i32 = arith.constant 8 : i32
    %39 = vector.broadcast %c8_i32 : i32 to vector<64x8xi32>
    %40 = arith.muli %38, %39 : vector<64x8xi32>
    %41 = arith.cmpi sge, %37, %40 : vector<64x8xi32>
    %c1_i32 = arith.constant 1 : i32
    %42 = vector.broadcast %c1_i32 : i32 to vector<64x8xi32>
    %43 = arith.addi %38, %42 : vector<64x8xi32>
    %c8_i32_25 = arith.constant 8 : i32
    %44 = vector.broadcast %c8_i32_25 : i32 to vector<64x8xi32>
    %45 = arith.muli %43, %44 : vector<64x8xi32>
    %46 = arith.cmpi slt, %37, %45 : vector<64x8xi32>
    %47 = arith.andi %41, %46 : vector<64x8xi1>
    %48 = arith.extui %47 : vector<64x8xi1> to vector<64x8xi32>
    %49 = arith.sitofp %48 : vector<64x8xi32> to vector<64x8xf32>
    %cst_26 = arith.constant dense<0.000000e+00> : vector<64x32xf32>
    %50 = tpu.matmul %49, %36, %cst_26 {dimension_numbers = #tpu.dot_dimension_numbers<[1], [0], [0], [1], [0, 0, 1, 1], [], []>} : vector<64x8xf32>, vector<8x32xf32>, vector<64x32xf32> -> vector<64x32xf32>
    %51 = tpu.iota {dimensions = array<i32: 0>} : vector<64x64xi32>
    %52 = tpu.iota {dimensions = array<i32: 1>} : vector<64x64xi32>
    %53 = arith.cmpi eq, %51, %52 : vector<64x64xi32>
    %54 = arith.extui %53 : vector<64x64xi1> to vector<64x64xi32>
    %55 = arith.sitofp %54 : vector<64x64xi32> to vector<64x64xf32>
    %cst_27 = arith.constant dense<0.000000e+00> : vector<64x4xf32>
    %56 = tpu.matmul %24, %20, %cst_27 {dimension_numbers = #tpu.dot_dimension_numbers<[1], [1], [0], [0], [0, 0, 1, 0], [], []>} : vector<64x32xf32>, vector<4x32xf32>, vector<64x4xf32> -> vector<64x4xf32>
    %57 = vector.extract_strided_slice %56 {offsets = [0, 0], sizes = [64, 1], strides = [1, 1]} : vector<64x4xf32> to vector<64x1xf32>
    %58 = vector.extract_strided_slice %56 {offsets = [0, 2], sizes = [64, 1], strides = [1, 1]} : vector<64x4xf32> to vector<64x1xf32>
    %59 = vector.broadcast %58 : vector<64x1xf32> to vector<64x64xf32>
    %60 = arith.mulf %55, %59 : vector<64x64xf32>
    %cst_28 = arith.constant dense<0.000000e+00> : vector<64xf32>
    %61 = vector.multi_reduction <add>, %60, %cst_28 [0] : vector<64x64xf32> to vector<64xf32>
    %62 = vector.shape_cast %61 : vector<64xf32> to vector<1x64xf32>
    %63 = vector.broadcast %57 : vector<64x1xf32> to vector<64x64xf32>
    %64 = vector.broadcast %62 : vector<1x64xf32> to vector<64x64xf32>
    %65 = arith.addf %63, %64 : vector<64x64xf32>
    %66 = vector.extract_strided_slice %23 {offsets = [0, 0], sizes = [1, 1], strides = [1, 1]} : vector<1x32xf32> to vector<1x1xf32>
    %67 = vector.broadcast %66 : vector<1x1xf32> to vector<64x64xf32>
    %68 = arith.addf %65, %67 : vector<64x64xf32>
    %69 = math.tanh %68 : vector<64x64xf32>
    %70 = arith.mulf %4, %69 : vector<64x64xf32>
    %cst_29 = arith.constant dense<0.000000e+00> : vector<64x32xf32>
    %71 = tpu.matmul %70, %24, %cst_29 {dimension_numbers = #tpu.dot_dimension_numbers<[1], [0], [0], [1], [0, 0, 1, 1], [], []>} : vector<64x64xf32>, vector<64x32xf32>, vector<64x32xf32> -> vector<64x32xf32>
    %cst_30 = arith.constant 3.000000e-01 : f32
    %72 = vector.broadcast %cst_30 : f32 to vector<64x32xf32>
    %73 = arith.mulf %72, %24 : vector<64x32xf32>
    %74 = arith.mulf %50, %71 : vector<64x32xf32>
    %75 = arith.addf %73, %74 : vector<64x32xf32>
    %cst_31 = arith.constant 0.000000e+00 : f32
    %76 = vector.broadcast %cst_31 : f32 to vector<64x32xf32>
    %77 = arith.maximumf %75, %76 : vector<64x32xf32>
    %cst_32 = arith.constant dense<0.000000e+00> : vector<64x4xf32>
    %78 = tpu.matmul %77, %20, %cst_32 {dimension_numbers = #tpu.dot_dimension_numbers<[1], [1], [0], [0], [0, 0, 1, 0], [], []>} : vector<64x32xf32>, vector<4x32xf32>, vector<64x4xf32> -> vector<64x4xf32>
    %79 = vector.extract_strided_slice %78 {offsets = [0, 1], sizes = [64, 1], strides = [1, 1]} : vector<64x4xf32> to vector<64x1xf32>
    %80 = vector.extract_strided_slice %78 {offsets = [0, 3], sizes = [64, 1], strides = [1, 1]} : vector<64x4xf32> to vector<64x1xf32>
    %81 = vector.broadcast %80 : vector<64x1xf32> to vector<64x64xf32>
    %82 = arith.mulf %55, %81 : vector<64x64xf32>
    %cst_33 = arith.constant dense<0.000000e+00> : vector<64xf32>
    %83 = vector.multi_reduction <add>, %82, %cst_33 [0] : vector<64x64xf32> to vector<64xf32>
    %84 = vector.shape_cast %83 : vector<64xf32> to vector<1x64xf32>
    %85 = vector.broadcast %79 : vector<64x1xf32> to vector<64x64xf32>
    %86 = vector.broadcast %84 : vector<1x64xf32> to vector<64x64xf32>
    %87 = arith.addf %85, %86 : vector<64x64xf32>
    %88 = vector.extract_strided_slice %23 {offsets = [0, 1], sizes = [1, 1], strides = [1, 1]} : vector<1x32xf32> to vector<1x1xf32>
    %89 = vector.broadcast %88 : vector<1x1xf32> to vector<64x64xf32>
    %90 = arith.addf %87, %89 : vector<64x64xf32>
    %91 = math.tanh %90 : vector<64x64xf32>
    %92 = arith.mulf %4, %91 : vector<64x64xf32>
    %cst_34 = arith.constant dense<0.000000e+00> : vector<64x32xf32>
    %93 = tpu.matmul %92, %77, %cst_34 {dimension_numbers = #tpu.dot_dimension_numbers<[1], [0], [0], [1], [0, 0, 1, 1], [], []>} : vector<64x64xf32>, vector<64x32xf32>, vector<64x32xf32> -> vector<64x32xf32>
    %cst_35 = arith.constant 3.000000e-01 : f32
    %94 = vector.broadcast %cst_35 : f32 to vector<64x32xf32>
    %95 = arith.mulf %94, %77 : vector<64x32xf32>
    %96 = arith.mulf %50, %93 : vector<64x32xf32>
    %97 = arith.addf %95, %96 : vector<64x32xf32>
    %cst_36 = arith.constant 0.000000e+00 : f32
    %98 = vector.broadcast %cst_36 : f32 to vector<64x32xf32>
    %99 = arith.maximumf %97, %98 : vector<64x32xf32>
    %cst_37 = arith.constant dense<0.000000e+00> : vector<8x32xf32>
    %100 = tpu.matmul %12, %99, %cst_37 {dimension_numbers = #tpu.dot_dimension_numbers<[1], [0], [0], [1], [0, 0, 1, 1], [], []>} : vector<8x64xf32>, vector<64x32xf32>, vector<8x32xf32> -> vector<8x32xf32>
    %c0_38 = arith.constant 0 : index
    %c0_39 = arith.constant 0 : index
    %c0_40 = arith.constant 0 : index
    %101 = vector.load %arg4[%c0_38, %c0_39, %c0_40] : memref<1x8x32xf32, #tpu.memory_space<vmem>>, vector<1x8x32xf32>
    %102 = vector.shape_cast %101 : vector<1x8x32xf32> to vector<8x32xf32>
    %103 = vector.shape_cast %100 : vector<8x32xf32> to vector<1x8x32xf32>
    tpu.vector_store %arg4[%c0_38, %c0_39, %c0_40], %103 {strides = array<i32>} : memref<1x8x32xf32, #tpu.memory_space<vmem>>, vector<1x8x32xf32>,
    return
  }
  func.func @transform_0(%arg0: i32) -> (i32, i32, i32) {
    %c0_i32 = arith.constant 0 : i32
    %c0_i32_0 = arith.constant 0 : i32
    %c0_i32_1 = arith.constant 0 : i32
    return %arg0, %c0_i32, %c0_i32_0 : i32, i32, i32
  }
  func.func @transform_1(%arg0: i32) -> (i32, i32) {
    %c0_i32 = arith.constant 0 : i32
    %c0_i32_0 = arith.constant 0 : i32
    %c0_i32_1 = arith.constant 0 : i32
    return %c0_i32, %c0_i32_0 : i32, i32
  }
  func.func @transform_2(%arg0: i32) -> (i32, i32) {
    %c0_i32 = arith.constant 0 : i32
    %c0_i32_0 = arith.constant 0 : i32
    %c0_i32_1 = arith.constant 0 : i32
    return %c0_i32, %c0_i32_0 : i32, i32
  }
  func.func @transform_3(%arg0: i32) -> (i32, i32, i32) {
    %c0_i32 = arith.constant 0 : i32
    %c0_i32_0 = arith.constant 0 : i32
    %c0_i32_1 = arith.constant 0 : i32
    return %arg0, %c0_i32, %c0_i32_0 : i32, i32, i32
  }
}

</mosaic_0001>

<llo_original>
// kernel: tpu_custom_call.1
$region0: #{tpu_custom_call.1}
  #allocation0 [shape = 'u32[]', space=smem, size = 0x4, offset = 0x4, fixed_abs, tag = 'smem constant byte address 0x4 - core index']
  #allocation1 [shape = 'u32[144,128]{1,0:T(1,128)}', space=vmem, size = 0x12000, scoped, tag = 'internal scratch']
  %s0 = inlined_call_operand.hbm [shape: bf16[8,152,128], index: 0, kind: input, shape index: {}]
  %s1 = inlined_call_operand.vmem [shape: bf16[232,32], index: 1, kind: input, shape index: {}]
  %s2 = inlined_call_operand.vmem [shape: f32[8,32], index: 2, kind: input, shape index: {}]
  %s3 = inlined_call_operand.hbm [shape: f32[8,8,32], index: 3, kind: output, shape index: {}]
  %s4 = sld [smem:[#allocation0]]
  $region49: #{tpu_custom_call.1} parent=0
    _
  %s6 = ssub.s32 1, %s4
  %s7 = scalar_select 0, %s6, %s4
  $region1: #{tpu_custom_call.1} parent=0
    #allocation2 [shape = 'u8[77824]{0}', space=vmem, size = 0x13000, scoped, tag = 'input window, operand 0']
    #allocation3 [shape = 's32[2]{0}', space=sflag, size = 0x8, scoped, tag = 'scoped memory for tpu_custom_call.1']
    #allocation4 [shape = 's32[2]{0}', space=sflag, size = 0x8, scoped, tag = 'scoped memory for tpu_custom_call.1']
    #allocation5 [shape = 'u8[8192]{0}', space=vmem, size = 0x2000, scoped, tag = 'output window, operand 0']
    %8 = vsyncpa [#allocation3], 0
    %s9 = scalar_lea.sflag [#allocation3], 1
    %10 = vsyncpa %s9, 0
    %11 = vsyncpa [#allocation4], 0
    %s12 = scalar_lea.sflag [#allocation4], 1
    %13 = vsyncpa %s12, 0
    loop: start=0, step=1, limit=10
    $region2: #{tpu_custom_call.1} parent=1 // loop_pre_header
      _
    $region3: #{tpu_custom_call.1} parent=1 // loop_header
      %s15 = sphi 0, %s19
      %p16 = scmp.ge.s32.totalorder %s15, 10
      %s25 = sphi 0, %s27
      %s28 = sphi 0, %s25
      %s29 = sphi 0, %s28
      %s45 = sphi 0, %s29
      %s49 = sphi 0, %s49
      %s51 = sphi 0, %s49
      %s52 = sphi 0, %s51
      %s66 = sphi 0, %s52
      %s70 = sphi 0, %s70
      %s72 = sphi 0, %s70
      %s73 = sphi 0, %s72
      %s87 = sphi 0, %s73
      %s93 = sphi 0, %s95
      %s96 = sphi 0, %s93
      %s97 = sphi 0, %s96
      %s113 = sphi 0, %s97
    $region4: #{tpu_custom_call.1} parent=1 // loop_header_branch
      %18 = sbr.rel (%p16) target = $region8
    $region5: #{tpu_custom_call.1} parent=1 // loop_body
      %s20 = ssub.s32 %s15, 1
      %s21 = ssub.s32 %s15, 2
      %s22 = sadd.s32 %s15, 1
      %s23 = ssub.s32 %s15, %s22
      %p24 = scmp.eq.s32.totalorder %s23, 0
      %s26 = sadd.s32 %s25, 1
      %s27 = scalar_select %p24, %s25, %s26
      %p30 = pneg %p24
      %p31 = scmp.eq.s32.totalorder %s15, 7
      %p32 = por %p30, %p31
      %p33 = scmp.ne.s32.totalorder %s25, %s28
      %p34 = scmp.eq.s32.totalorder %s15, 0
      %p35 = por %p33, %p34
      %p36 = scmp.ne.s32.totalorder %s25, %s28
      %p37 = scmp.eq.s32.totalorder %s20, 7
      %p38 = por %p36, %p37
      %p39 = scmp.ne.s32.totalorder %s28, %s29
      %p40 = scmp.eq.s32.totalorder %s20, 0
      %p41 = por %p39, %p40
      %p42 = scmp.ne.s32.totalorder %s28, %s29
      %p43 = scmp.eq.s32.totalorder %s21, 7
      %p44 = por %p42, %p43
      %p46 = scmp.ne.s32.totalorder %s29, %s45
      %p47 = scmp.eq.s32.totalorder %s21, 0
      %p48 = por %p46, %p47
      %s50 = sadd.s32 %s49, 1
      %p53 = scmp.eq.s32.totalorder %s15, 7
      %p54 = scmp.ne.s32.totalorder %s49, %s51
      %p55 = scmp.eq.s32.totalorder %s15, 0
      %p56 = por %p54, %p55
      %p57 = scmp.ne.s32.totalorder %s49, %s51
      %p58 = scmp.eq.s32.totalorder %s20, 7
      %p59 = por %p57, %p58
      %p60 = scmp.ne.s32.totalorder %s51, %s52
      %p61 = scmp.eq.s32.totalorder %s20, 0
      %p62 = por %p60, %p61
      %p63 = scmp.ne.s32.totalorder %s51, %s52
      %p64 = scmp.eq.s32.totalorder %s21, 7
      %p65 = por %p63, %p64
      %p67 = scmp.ne.s32.totalorder %s52, %s66
      %p68 = scmp.eq.s32.totalorder %s21, 0
      %p69 = por %p67, %p68
      %s71 = sadd.s32 %s70, 1
      %p74 = scmp.eq.s32.totalorder %s15, 7
      %p75 = scmp.ne.s32.totalorder %s70, %s72
      %p76 = scmp.eq.s32.totalorder %s15, 0
      %p77 = por %p75, %p76
      %p78 = scmp.ne.s32.totalorder %s70, %s72
      %p79 = scmp.eq.s32.totalorder %s20, 7
      %p80 = por %p78, %p79
      %p81 = scmp.ne.s32.totalorder %s72, %s73
      %p82 = scmp.eq.s32.totalorder %s20, 0
      %p83 = por %p81, %p82
      %p84 = scmp.ne.s32.totalorder %s72, %s73
      %p85 = scmp.eq.s32.totalorder %s21, 7
      %p86 = por %p84, %p85
      %p88 = scmp.ne.s32.totalorder %s73, %s87
      %p89 = scmp.eq.s32.totalorder %s21, 0
      %p90 = por %p88, %p89
      %s91 = ssub.s32 %s15, %s22
      %p92 = scmp.eq.s32.totalorder %s91, 0
      %s94 = sadd.s32 %s93, 1
      %s95 = scalar_select %p92, %s93, %s94
      %p98 = pneg %p92
      %p99 = scmp.eq.s32.totalorder %s15, 7
      %p100 = por %p98, %p99
      %p101 = scmp.ne.s32.totalorder %s93, %s96
      %p102 = scmp.eq.s32.totalorder %s15, 0
      %p103 = por %p101, %p102
      %p104 = scmp.ne.s32.totalorder %s93, %s96
      %p105 = scmp.eq.s32.totalorder %s20, 7
      %p106 = por %p104, %p105
      %p107 = scmp.ne.s32.totalorder %s96, %s97
      %p108 = scmp.eq.s32.totalorder %s20, 0
      %p109 = por %p107, %p108
      %p110 = scmp.ne.s32.totalorder %s96, %s97
      %p111 = scmp.eq.s32.totalorder %s21, 7
      %p112 = por %p110, %p111
      %p114 = scmp.ne.s32.totalorder %s97, %s113
      %p115 = scmp.eq.s32.totalorder %s21, 0
      %p116 = por %p114, %p115
      %p117 = scmp.le.s32.totalorder 1, %s15
      %p118 = scmp.lt.s32.totalorder %s15, 9
      %p119 = pnand %p117, %p118
      %p120 = pneg %p119
      // Predicated region
      $region9: #{tpu_custom_call.1} parent=5 // pred_check
        _
      $region10: #{tpu_custom_call.1} parent=5 // pred_check_branch
        %122 = sbr.rel (%p119) target = $region12
      $region11: #{tpu_custom_call.1} parent=5 // pred_region
        %s123 = ssub.s32 %s15, 1
        // Predicated region
        $region13: #{tpu_custom_call.1} parent=11 // pred_check
          %p124 = pneg %p62
        $region14: #{tpu_custom_call.1} parent=11 // pred_check_branch
          %126 = sbr.rel (%p124) target = $region16
        $region15: #{tpu_custom_call.1} parent=11 // pred_region
          _
        $region16: #{tpu_custom_call.1} parent=11 // pred_fallthru
          _
        // Predicated region
        $region17: #{tpu_custom_call.1} parent=11 // pred_check
          %p127 = pneg %p83
        $region18: #{tpu_custom_call.1} parent=11 // pred_check_branch
          %129 = sbr.rel (%p127) target = $region20
        $region19: #{tpu_custom_call.1} parent=11 // pred_region
          _
        $region20: #{tpu_custom_call.1} parent=11 // pred_fallthru
          _
      $region12: #{tpu_custom_call.1} parent=5 // pred_fallthru
        _
      %p130 = scmp.lt.s32.totalorder %s15, 8
      // Predicated region
      $region21: #{tpu_custom_call.1} parent=5 // pred_check
        %p131 = pneg %p130
      $region22: #{tpu_custom_call.1} parent=5 // pred_check_branch
        %133 = sbr.rel (%p131) target = $region24
      $region23: #{tpu_custom_call.1} parent=5 // pred_region
        // Predicated region
        $region25: #{tpu_custom_call.1} parent=23 // pred_check
          %p134 = pneg %p35
        $region26: #{tpu_custom_call.1} parent=23 // pred_check_branch
          %136 = sbr.rel (%p134) target = $region28
        $region27: #{tpu_custom_call.1} parent=23 // pred_region
          %s137 = sand.u32 %s25, 1
          %s138 = scalar_lea.sflag [#allocation3], %s137
          %s139 = sand.u32 %s25, 1
          %s140 = smul.addr %s139, 76
          %s141 = scalar_lea.vmem [#allocation2], %s140
          %s143 = ssub.s32 1216, 1216
          %144 = vsyncadd %s138, %s143
          %s145 = smul.addr %s15, 19
          %s146 = smul.addr %s145, 64
          %s147 = scalar_lea.hbm %s0, %s146
          %s148 = sshll.u32 %s141, 4
          %s149 = int_to_ptr.vmem [resolvable:$true] %s148
          %154 = dma.hbm_to_vmem [thread:$0]  %s147, 1216, %s149, %s138, 64, 64, 4
        $region28: #{tpu_custom_call.1} parent=23 // pred_fallthru
          _
      $region24: #{tpu_custom_call.1} parent=5 // pred_fallthru
        _
      %p155 = scmp.le.s32.totalorder 1, %s15
      %p156 = scmp.lt.s32.totalorder %s15, 9
      %p157 = pnand %p155, %p156
      %p158 = pneg %p157
      // Predicated region
      $region29: #{tpu_custom_call.1} parent=5 // pred_check
        _
      $region30: #{tpu_custom_call.1} parent=5 // pred_check_branch
        %160 = sbr.rel (%p157) target = $region32
      $region31: #{tpu_custom_call.1} parent=5 // pred_region
        %s161 = ssub.s32 %s15, 1
        %s162 = sand.u32 %s28, 1
        %s163 = scalar_lea.sflag [#allocation3], %s162
        %s164 = sand.u32 %s28, 1
        %s165 = smul.addr %s164, 76
        %s166 = scalar_lea.vmem [#allocation2], %s165
        // Predicated region
        $region33: #{tpu_custom_call.1} parent=31 // pred_check
          %p167 = pneg %p41
        $region34: #{tpu_custom_call.1} parent=31 // pred_check_branch
          %169 = sbr.rel (%p167) target = $region36
        $region35: #{tpu_custom_call.1} parent=31 // pred_region
          %170 = dma.done %s163, 1216
        $region36: #{tpu_custom_call.1} parent=31 // pred_fallthru
          _
        %s171 = sand.u32 %s28, 1
        %s172 = scalar_lea.sflag [#allocation3], %s171
        %s173 = sand.u32 %s28, 1
        %s174 = smul.addr %s173, 76
        %s175 = scalar_lea.vmem [#allocation2], %s174
        %p176 = pneg %p41
        %p177 = pneg %p38
        %p178 = pneg %p62
        %p179 = pneg %p59
        %p180 = pneg %p83
        %p181 = pneg %p80
        %p182 = pneg %p109
        %p183 = pneg %p106
        %s184 = sand.u32 %s96, 1
        %s185 = scalar_lea.sflag [#allocation4], %s184
        %s186 = sand.u32 %s96, 1
        %s187 = smul.addr %s186, 8
        %s188 = scalar_lea.vmem [#allocation5], %s187
        %v190 = vld [vmem:[%s166] sm:$0xf]
        %v191 = vld [vmem:[%s166 + $0x4] sm:$0xf]
        %v192 = vld [vmem:[%s166 + $0x8] sm:$0xf]
        %v193 = vld [vmem:[%s166 + $0xc] sm:$0xf]
        %v194 = vld [vmem:[%s166 + $0x10] sm:$0xf]
        %v195 = vld [vmem:[%s166 + $0x14] sm:$0xf]
        %v196 = vld [vmem:[%s166 + $0x18] sm:$0xf]
        %v197 = vld [vmem:[%s166 + $0x1c] sm:$0xf]
        %v198 = vld [vmem:[%s166 + $0x20] sm:$0xf]
        %v199 = vld [vmem:[%s166 + $0x24] sm:$0xf]
        %v200 = vld [vmem:[%s166 + $0x28] sm:$0xf]
        %v201 = vld [vmem:[%s166 + $0x2c] sm:$0xf]
        %v202 = vld [vmem:[%s166 + $0x30] sm:$0xf]
        %v203 = vld [vmem:[%s166 + $0x34] sm:$0xf]
        %v204 = vld [vmem:[%s166 + $0x38] sm:$0xf]
        %v205 = vld [vmem:[%s166 + $0x3c] sm:$0xf]
        %v206 = vunpack.c.l.bf16 %v198
        %v207 = vunpack.c.l.bf16 %v199
        %v208 = vunpack.c.l.bf16 %v200
        %v209 = vunpack.c.l.bf16 %v201
        %v210 = vunpack.c.l.bf16 %v202
        %v211 = vunpack.c.l.bf16 %v203
        %v212 = vunpack.c.l.bf16 %v204
        %v213 = vunpack.c.l.bf16 %v205
        %v214 = vld [vmem:[%s166 + $0x40] sm:$0xf]
        %v215 = vld [vmem:[%s166 + $0x44] sm:$0xf]
        %v216 = vunpack.c.l.bf16 %v215
        %v217 = vld [vmem:[%s166 + $0x48] sm:$0xf]
        %v218 = vunpack.c.l.bf16 %v217
        %v219 = vld [vmem:[%s1] sm:$0xf]
        %v220 = vld [vmem:[%s1 + $0x4] sm:$0xf]
        %v221 = vld [vmem:[%s1 + $0x8] sm:$0xf]
        %v222 = vld [vmem:[%s1 + $0xc] sm:$0xf]
        %v223 = vld [vmem:[%s1 + $0x10] sm:$0xf]
        %v224 = vld [vmem:[%s1 + $0x14] sm:$0xf]
        %v225 = vld [vmem:[%s1 + $0x18] sm:$0xf]
        %v226 = vld [vmem:[%s1 + $0x1c] sm:$0xf]
        %v227 = vld [vmem:[%s1 + $0x20] sm:$0xf]
        %v228 = vld [vmem:[%s1 + $0x24] sm:$0xf]
        %v229 = vld [vmem:[%s1 + $0x28] sm:$0xf]
        %v230 = vld [vmem:[%s1 + $0x2c] sm:$0xf]
        %v231 = vld [vmem:[%s1 + $0x30] sm:$0xf]
        %v232 = vld [vmem:[%s1 + $0x34] sm:$0xf]
        %v233 = vld [vmem:[%s1 + $0x38] sm:$0xf]
        %v234 = vld [vmem:[%s1 + $0x3c] sm:$0xf]
        %v235 = vld [vmem:[%s1 + $0x40] sm:$0xf]
        %v236 = vld [vmem:[%s1 + $0x44] sm:$0xf]
        %v237 = vld [vmem:[%s1 + $0x48] sm:$0xf]
        %v238 = vld [vmem:[%s1 + $0x4c] sm:$0xf]
        %v239 = vld [vmem:[%s1 + $0x50] sm:$0xf]
        %v240 = vld [vmem:[%s1 + $0x54] sm:$0xf]
        %v241 = vld [vmem:[%s1 + $0x58] sm:$0xf]
        %v242 = vld [vmem:[%s1 + $0x5c] sm:$0xf]
        %v243 = vunpack.c.l.bf16 %v239
        %v244 = vunpack.c.l.bf16 %v240
        %v245 = vunpack.c.l.bf16 %v241
        %v246 = vunpack.c.l.bf16 %v242
        %v247 = vld [vmem:[%s1 + $0x60] sm:$0xf]
        %v248 = vld [vmem:[%s1 + $0x64] sm:$0xf]
        %v249 = vld [vmem:[%s1 + $0x68] sm:$0xf]
        %v250 = vld [vmem:[%s1 + $0x6c] sm:$0xf]
        %v251 = vunpack.c.l.bf16 %v247
        %v252 = vunpack.c.l.bf16 %v248
        %v253 = vunpack.c.l.bf16 %v249
        %v254 = vunpack.c.l.bf16 %v250
        %v255 = vld [vmem:[%s1 + $0x70] sm:$0x3]
        %v256 = vunpack.c.l.bf16 %v255
        %v257 = vld [vmem:[%s2] sm:$0x1]
        %v258 = vld [vmem:[%s2 + $0x1] sm:$0x1]
        %v259 = vld [vmem:[%s2 + $0x2] sm:$0x1]
        %v268 = vunpack.c.l.b16 %v190
        %v269 = vunpack.c.l.b16 %v191
        %v270 = vunpack.c.l.b16 %v192
        %v271 = vunpack.c.l.b16 %v193
        %v272 = vunpack.c.l.b16 %v194
        %v273 = vunpack.c.l.b16 %v195
        %v274 = vunpack.c.l.b16 %v196
        %v275 = vunpack.c.l.b16 %v197
        %v276 = vpack.c.b16 %v269, %v268
        %v277 = vpack.c.b16 %v271, %v270
        %v278 = vpack.c.b16 %v273, %v272
        %v279 = vpack.c.b16 %v275, %v274
        %v300 = vunpack.c.l.b16 %v219
        %v301 = vunpack.c.l.b16 %v220
        %v302 = vunpack.c.l.b16 %v221
        %v303 = vunpack.c.l.b16 %v222
        %v304 = vunpack.c.l.b16 %v223
        %v305 = vunpack.c.l.b16 %v224
        %v306 = vunpack.c.l.b16 %v225
        %v307 = vunpack.c.l.b16 %v226
        %v308 = vunpack.c.l.b16 %v227
        %v309 = vunpack.c.l.b16 %v228
        %v310 = vunpack.c.l.b16 %v229
        %v311 = vunpack.c.l.b16 %v230
        %v312 = vunpack.c.l.b16 %v231
        %v313 = vunpack.c.l.b16 %v232
        %v314 = vunpack.c.l.b16 %v233
        %v315 = vunpack.c.l.b16 %v234
        %v316 = vpack.c.b16 %v301, %v300
        %v317 = vpack.c.b16 %v303, %v302
        %v318 = vpack.c.b16 %v305, %v304
        %v319 = vpack.c.b16 %v307, %v306
        %v320 = vpack.c.b16 %v309, %v308
        %v321 = vpack.c.b16 %v311, %v310
        %v322 = vpack.c.b16 %v313, %v312
        %v323 = vpack.c.b16 %v315, %v314
        %332 = vmatprep.subr.bf16.mxu0 0
        %333 = vmatpush1.bf16.msra.mxu0 %v316
        %334 = vmatprep.subr.bf16.mxu0 0
        %335 = vmatpush1.bf16.msra.mxu0 %v317
        %336 = vmatprep.subr.bf16.mxu0 0
        %337 = vmatpush1.bf16.msra.mxu0 %v318
        %338 = vmatprep.subr.bf16.mxu0 0
        %339 = vmatpush1.bf16.msra.mxu0 %v319
        %340 = vmatprep.subr.bf16.mxu0 0
        %341 = vmatpush1.bf16.msra.mxu0 %v320
        %342 = vmatprep.subr.bf16.mxu0 0
        %343 = vmatpush1.bf16.msra.mxu0 %v321
        %344 = vmatprep.subr.bf16.mxu0 0
        %345 = vmatpush1.bf16.msra.mxu0 %v322
        %346 = vmatprep.subr.bf16.mxu0 0
        %347 = vmatpush1.bf16.msra.mxu0 %v323
        %348 = vmatprep.subr.bf16.mxu0 0
        %349 = vmatpush1.bf16.msra.mxu0 0
        %350 = vmatprep.subr.bf16.mxu0 0
        %351 = vmatpush1.bf16.msra.mxu0 0
        %352 = vmatprep.subr.bf16.mxu0 0
        %353 = vmatpush1.bf16.msra.mxu0 0
        %354 = vmatprep.subr.bf16.mxu0 0
        %355 = vmatpush1.bf16.msra.mxu0 0
        %356 = vmatprep.subr.bf16.mxu0 0
        %357 = vmatpush1.bf16.msra.mxu0 0
        %358 = vmatprep.subr.bf16.mxu0 0
        %359 = vmatpush1.bf16.msra.mxu0 0
        %360 = vmatprep.subr.bf16.mxu0 0
        %361 = vmatpush1.bf16.msra.mxu0 0
        %362 = vmatprep.subr.bf16.mxu0 0
        %363 = vmatpush1.bf16.msra.mxu0 0
        %364 = vmatprep.mubr.bf16.mxu0 0
        %365 = vmatmul.mubr.bf16.gmra.mrb[0].mxu0 %v276
        %v366 = vpop.f32.mrb[0].mxu0
        %v367 = vadd.f32 0.0, %v366
        %v368 = vpop.f32.mrb[0].mxu0
        %v369 = vpop.f32.mrb[0].mxu0
        %v370 = vadd.f32 0.0, %v369
        %v371 = vpop.f32.mrb[0].mxu0
        %372 = vmatprep.mubr.bf16.mxu0 0
        %373 = vmatmul.mubr.bf16.gmra.mrb[0].mxu0 %v277
        %v374 = vpop.f32.mrb[0].mxu0
        %v375 = vadd.f32 0.0, %v374
        %v376 = vpop.f32.mrb[0].mxu0
        %v377 = vpop.f32.mrb[0].mxu0
        %v378 = vadd.f32 0.0, %v377
        %v379 = vpop.f32.mrb[0].mxu0
        %380 = vmatprep.mubr.bf16.mxu0 0
        %381 = vmatmul.mubr.bf16.gmra.mrb[0].mxu0 %v278
        %v382 = vpop.f32.mrb[0].mxu0
        %v383 = vadd.f32 0.0, %v382
        %v384 = vpop.f32.mrb[0].mxu0
        %v385 = vpop.f32.mrb[0].mxu0
        %v386 = vadd.f32 0.0, %v385
        %v387 = vpop.f32.mrb[0].mxu0
        %388 = vmatprep.mubr.bf16.mxu0 0
        %389 = vmatmul.mubr.bf16.gmra.mrb[0].mxu0 %v279
        %v390 = vpop.f32.mrb[0].mxu0
        %v391 = vadd.f32 0.0, %v390
        %v392 = vpop.f32.mrb[0].mxu0
        %v393 = vpop.f32.mrb[0].mxu0
        %v394 = vadd.f32 0.0, %v393
        %v395 = vpop.f32.mrb[0].mxu0
        %396 = vdwg.mxu0
        %v401 = vunpack.c.l.b16 %v235
        %v402 = vunpack.c.l.b16 %v236
        %v403 = vunpack.c.l.b16 %v237
        %v404 = vunpack.c.l.b16 %v238
        %v405 = vpack.c.b16 %v402, %v401
        %v406 = vpack.c.b16 %v404, %v403
        %vm409 = vcmask 261120
        %v411 = vsel %vm409, %v214, 0
        %413 = vmatprep.subr.bf16.mxu0 0
        %414 = vmatpush1.bf16.msra.mxu0 %v405
        %415 = vmatprep.subr.bf16.mxu0 0
        %416 = vmatpush1.bf16.msra.mxu0 %v406
        %417 = vmatprep.subr.bf16.mxu0 0
        %418 = vmatpush1.bf16.msra.mxu0 0
        %419 = vmatprep.subr.bf16.mxu0 0
        %420 = vmatpush1.bf16.msra.mxu0 0
        %421 = vmatprep.subr.bf16.mxu0 0
        %422 = vmatpush1.bf16.msra.mxu0 0
        %423 = vmatprep.subr.bf16.mxu0 0
        %424 = vmatpush1.bf16.msra.mxu0 0
        %425 = vmatprep.subr.bf16.mxu0 0
        %426 = vmatpush1.bf16.msra.mxu0 0
        %427 = vmatprep.subr.bf16.mxu0 0
        %428 = vmatpush1.bf16.msra.mxu0 0
        %429 = vmatprep.subr.bf16.mxu0 0
        %430 = vmatpush1.bf16.msra.mxu0 0
        %431 = vmatprep.subr.bf16.mxu0 0
        %432 = vmatpush1.bf16.msra.mxu0 0
        %433 = vmatprep.subr.bf16.mxu0 0
        %434 = vmatpush1.bf16.msra.mxu0 0
        %435 = vmatprep.subr.bf16.mxu0 0
        %436 = vmatpush1.bf16.msra.mxu0 0
        %437 = vmatprep.subr.bf16.mxu0 0
        %438 = vmatpush1.bf16.msra.mxu0 0
        %439 = vmatprep.subr.bf16.mxu0 0
        %440 = vmatpush1.bf16.msra.mxu0 0
        %441 = vmatprep.subr.bf16.mxu0 0
        %442 = vmatpush1.bf16.msra.mxu0 0
        %443 = vmatprep.subr.bf16.mxu0 0
        %444 = vmatpush1.bf16.msra.mxu0 0
        %445 = vmatprep.mubr.bf16.mxu0 0
        %446 = vmatmul.mubr.bf16.gmra.mrb[0].mxu0 %v411
        %v447 = vpop.f32.mrb[0].mxu0
        %v448 = vadd.f32 0.0, %v447
        %v449 = vpop.f32.mrb[0].mxu0
        %v450 = vpop.f32.mrb[0].mxu0
        %v451 = vpop.f32.mrb[0].mxu0
        %452 = vdwg.mxu0
        %vm453 = vcmask 64512
        %v455 = vsel %vm453, %v216, 0
        %457 = vmatprep.subr.mxu0 0.0
        %458 = vmatpush1.msra.mxu0 %v448
        %459 = vmatprep.subr.mxu0 0.0
        %460 = vmatpush1.msra.mxu0 0.0
        %461 = vmatprep.subr.mxu0 0.0
        %462 = vmatpush1.msra.mxu0 0.0
        %463 = vmatprep.subr.mxu0 0.0
        %464 = vmatpush1.msra.mxu0 0.0
        %465 = vmatprep.subr.mxu0 0.0
        %466 = vmatpush1.msra.mxu0 0.0
        %467 = vmatprep.subr.mxu0 0.0
        %468 = vmatpush1.msra.mxu0 0.0
        %469 = vmatprep.subr.mxu0 0.0
        %470 = vmatpush1.msra.mxu0 0.0
        %471 = vmatprep.subr.mxu0 0.0
        %472 = vmatpush1.msra.mxu0 0.0
        %473 = vmatprep.subr.mxu0 0.0
        %474 = vmatpush1.msra.mxu0 0.0
        %475 = vmatprep.subr.mxu0 0.0
        %476 = vmatpush1.msra.mxu0 0.0
        %477 = vmatprep.subr.mxu0 0.0
        %478 = vmatpush1.msra.mxu0 0.0
        %479 = vmatprep.subr.mxu0 0.0
        %480 = vmatpush1.msra.mxu0 0.0
        %481 = vmatprep.subr.mxu0 0.0
        %482 = vmatpush1.msra.mxu0 0.0
        %483 = vmatprep.subr.mxu0 0.0
        %484 = vmatpush1.msra.mxu0 0.0
        %485 = vmatprep.subr.mxu0 0.0
        %486 = vmatpush1.msra.mxu0 0.0
        %487 = vmatprep.subr.mxu0 0.0
        %488 = vmatpush1.msra.mxu0 0.0
        %489 = vmatprep.subr.mxu0 0.0
        %490 = vmatpush1.msra.mxu0 0.0
        %491 = vmatprep.subr.mxu0 0.0
        %492 = vmatpush1.msra.mxu0 0.0
        %493 = vmatprep.subr.mxu0 0.0
        %494 = vmatpush1.msra.mxu0 0.0
        %495 = vmatprep.subr.mxu0 0.0
        %496 = vmatpush1.msra.mxu0 0.0
        %497 = vmatprep.subr.mxu0 0.0
        %498 = vmatpush1.msra.mxu0 0.0
        %499 = vmatprep.subr.mxu0 0.0
        %500 = vmatpush1.msra.mxu0 0.0
        %501 = vmatprep.subr.mxu0 0.0
        %502 = vmatpush1.msra.mxu0 0.0
        %503 = vmatprep.subr.mxu0 0.0
        %504 = vmatpush1.msra.mxu0 0.0
        %505 = vmatprep.subr.mxu0 0.0
        %506 = vmatpush1.msra.mxu0 0.0
        %507 = vmatprep.subr.mxu0 0.0
        %508 = vmatpush1.msra.mxu0 0.0
        %509 = vmatprep.subr.mxu0 0.0
        %510 = vmatpush1.msra.mxu0 0.0
        %511 = vmatprep.subr.mxu0 0.0
        %512 = vmatpush1.msra.mxu0 0.0
        %513 = vmatprep.subr.mxu0 0.0
        %514 = vmatpush1.msra.mxu0 0.0
        %515 = vmatprep.subr.mxu0 0.0
        %516 = vmatpush1.msra.mxu0 0.0
        %517 = vmatprep.subr.mxu0 0.0
        %518 = vmatpush1.msra.mxu0 0.0
        %519 = vmatprep.subr.mxu0 0.0
        %520 = vmatpush1.msra.mxu0 0.0
        %521 = vmatprep.mubr.f32.mxu0 0.0
        %522 = vmatmul.mubr.f32.gmra.mrb[0].mxu0 %v455
        %v523 = vpop.f32.mrb[0].mxu0
        %v524 = vadd.f32 0.0, %v523
        %v525 = vpop.f32.mrb[0].mxu0
        %526 = vdwg.mxu0
        %v527 = vlaneseq
        %v528 = vshrl.u32 %v527, 7
        %v529 = vsub.s32 0, %v528
        %v530 = vrot.slane %v257, %v529
        %v532 = vsel %vm409, %v448, 0
        %534 = vmatprep.subr.mxu0 0.0
        %535 = vmatpush1.msra.mxu0 %v243
        %536 = vmatprep.subr.mxu0 0.0
        %537 = vmatpush1.msra.mxu0 %v244
        %538 = vmatprep.subr.mxu0 0.0
        %539 = vmatpush1.msra.mxu0 %v245
        %540 = vmatprep.subr.mxu0 0.0
        %541 = vmatpush1.msra.mxu0 %v246
        %542 = vmatprep.subr.mxu0 0.0
        %543 = vmatpush1.msra.mxu0 0.0
        %544 = vmatprep.subr.mxu0 0.0
        %545 = vmatpush1.msra.mxu0 0.0
        %546 = vmatprep.subr.mxu0 0.0
        %547 = vmatpush1.msra.mxu0 0.0
        %548 = vmatprep.subr.mxu0 0.0
        %549 = vmatpush1.msra.mxu0 0.0
        %550 = vmatprep.subr.mxu0 0.0
        %551 = vmatpush1.msra.mxu0 0.0
        %552 = vmatprep.subr.mxu0 0.0
        %553 = vmatpush1.msra.mxu0 0.0
        %554 = vmatprep.subr.mxu0 0.0
        %555 = vmatpush1.msra.mxu0 0.0
        %556 = vmatprep.subr.mxu0 0.0
        %557 = vmatpush1.msra.mxu0 0.0
        %558 = vmatprep.subr.mxu0 0.0
        %559 = vmatpush1.msra.mxu0 0.0
        %560 = vmatprep.subr.mxu0 0.0
        %561 = vmatpush1.msra.mxu0 0.0
        %562 = vmatprep.subr.mxu0 0.0
        %563 = vmatpush1.msra.mxu0 0.0
        %564 = vmatprep.subr.mxu0 0.0
        %565 = vmatpush1.msra.mxu0 0.0
        %566 = vmatprep.subr.mxu0 0.0
        %567 = vmatpush1.msra.mxu0 0.0
        %568 = vmatprep.subr.mxu0 0.0
        %569 = vmatpush1.msra.mxu0 0.0
        %570 = vmatprep.subr.mxu0 0.0
        %571 = vmatpush1.msra.mxu0 0.0
        %572 = vmatprep.subr.mxu0 0.0
        %573 = vmatpush1.msra.mxu0 0.0
        %574 = vmatprep.subr.mxu0 0.0
        %575 = vmatpush1.msra.mxu0 0.0
        %576 = vmatprep.subr.mxu0 0.0
        %577 = vmatpush1.msra.mxu0 0.0
        %578 = vmatprep.subr.mxu0 0.0
        %579 = vmatpush1.msra.mxu0 0.0
        %580 = vmatprep.subr.mxu0 0.0
        %581 = vmatpush1.msra.mxu0 0.0
        %582 = vmatprep.subr.mxu0 0.0
        %583 = vmatpush1.msra.mxu0 0.0
        %584 = vmatprep.subr.mxu0 0.0
        %585 = vmatpush1.msra.mxu0 0.0
        %586 = vmatprep.subr.mxu0 0.0
        %587 = vmatpush1.msra.mxu0 0.0
        %588 = vmatprep.subr.mxu0 0.0
        %589 = vmatpush1.msra.mxu0 0.0
        %590 = vmatprep.subr.mxu0 0.0
        %591 = vmatpush1.msra.mxu0 0.0
        %592 = vmatprep.subr.mxu0 0.0
        %593 = vmatpush1.msra.mxu0 0.0
        %594 = vmatprep.subr.mxu0 0.0
        %595 = vmatpush1.msra.mxu0 0.0
        %596 = vmatprep.subr.mxu0 0.0
        %597 = vmatpush1.msra.mxu0 0.0
        %598 = vmatprep.mubr.f32.mxu0 0.0
        %599 = vmatmul.mubr.f32.gmra.mrb[0].mxu0 %v532
        %v600 = vpop.f32.mrb[0].mxu0
        %v601 = vadd.f32 %v530, %v600
        %v602 = vpop.f32.mrb[0].mxu0
        %603 = vdwg.mxu0
        %v604 = vtanh.pop %v601
        %v605 = vmul.f32 %v604, %v524
        %v606 = vadd.f32 %v448, %v605
        %v607 = vlaneseq
        %v608 = vshrl.u32 %v607, 7
        %v609 = vsub.s32 0, %v608
        %v610 = vrot.slane %v258, %v609
        %v612 = vsel %vm409, %v606, 0
        %614 = vmatprep.subr.mxu0 0.0
        %615 = vmatpush1.msra.mxu0 %v251
        %616 = vmatprep.subr.mxu0 0.0
        %617 = vmatpush1.msra.mxu0 %v252
        %618 = vmatprep.subr.mxu0 0.0
        %619 = vmatpush1.msra.mxu0 %v253
        %620 = vmatprep.subr.mxu0 0.0
        %621 = vmatpush1.msra.mxu0 %v254
        %622 = vmatprep.subr.mxu0 0.0
        %623 = vmatpush1.msra.mxu0 0.0
        %624 = vmatprep.subr.mxu0 0.0
        %625 = vmatpush1.msra.mxu0 0.0
        %626 = vmatprep.subr.mxu0 0.0
        %627 = vmatpush1.msra.mxu0 0.0
        %628 = vmatprep.subr.mxu0 0.0
        %629 = vmatpush1.msra.mxu0 0.0
        %630 = vmatprep.subr.mxu0 0.0
        %631 = vmatpush1.msra.mxu0 0.0
        %632 = vmatprep.subr.mxu0 0.0
        %633 = vmatpush1.msra.mxu0 0.0
        %634 = vmatprep.subr.mxu0 0.0
        %635 = vmatpush1.msra.mxu0 0.0
        %636 = vmatprep.subr.mxu0 0.0
        %637 = vmatpush1.msra.mxu0 0.0
        %638 = vmatprep.subr.mxu0 0.0
        %639 = vmatpush1.msra.mxu0 0.0
        %640 = vmatprep.subr.mxu0 0.0
        %641 = vmatpush1.msra.mxu0 0.0
        %642 = vmatprep.subr.mxu0 0.0
        %643 = vmatpush1.msra.mxu0 0.0
        %644 = vmatprep.subr.mxu0 0.0
        %645 = vmatpush1.msra.mxu0 0.0
        %646 = vmatprep.subr.mxu0 0.0
        %647 = vmatpush1.msra.mxu0 0.0
        %648 = vmatprep.subr.mxu0 0.0
        %649 = vmatpush1.msra.mxu0 0.0
        %650 = vmatprep.subr.mxu0 0.0
        %651 = vmatpush1.msra.mxu0 0.0
        %652 = vmatprep.subr.mxu0 0.0
        %653 = vmatpush1.msra.mxu0 0.0
        %654 = vmatprep.subr.mxu0 0.0
        %655 = vmatpush1.msra.mxu0 0.0
        %656 = vmatprep.subr.mxu0 0.0
        %657 = vmatpush1.msra.mxu0 0.0
        %658 = vmatprep.subr.mxu0 0.0
        %659 = vmatpush1.msra.mxu0 0.0
        %660 = vmatprep.subr.mxu0 0.0
        %661 = vmatpush1.msra.mxu0 0.0
        %662 = vmatprep.subr.mxu0 0.0
        %663 = vmatpush1.msra.mxu0 0.0
        %664 = vmatprep.subr.mxu0 0.0
        %665 = vmatpush1.msra.mxu0 0.0
        %666 = vmatprep.subr.mxu0 0.0
        %667 = vmatpush1.msra.mxu0 0.0
        %668 = vmatprep.subr.mxu0 0.0
        %669 = vmatpush1.msra.mxu0 0.0
        %670 = vmatprep.subr.mxu0 0.0
        %671 = vmatpush1.msra.mxu0 0.0
        %672 = vmatprep.subr.mxu0 0.0
        %673 = vmatpush1.msra.mxu0 0.0
        %674 = vmatprep.subr.mxu0 0.0
        %675 = vmatpush1.msra.mxu0 0.0
        %676 = vmatprep.subr.mxu0 0.0
        %677 = vmatpush1.msra.mxu0 0.0
        %678 = vmatprep.mubr.f32.mxu0 0.0
        %679 = vmatmul.mubr.f32.gmra.mrb[0].mxu0 %v612
        %v680 = vpop.f32.mrb[0].mxu0
        %v681 = vadd.f32 %v610, %v680
        %v682 = vpop.f32.mrb[0].mxu0
        %683 = vdwg.mxu0
        %v684 = vtanh.pop %v681
        %v685 = vlaneseq
        %v686 = vshrl.u32 %v685, 7
        %v687 = vadd.s32 %v686, 8
        %v688 = vadd.s32 %v686, 16
        %v689 = vadd.s32 %v686, 24
        %v690 = vadd.s32 %v686, 32
        %v691 = vadd.s32 %v686, 40
        %v692 = vadd.s32 %v686, 48
        %v693 = vadd.s32 %v686, 56
        %v694 = vlaneseq
        %v695 = vand.u32 %v694, 127
        %v696 = vmul.u32 %v695, 8
        %vm697 = vcmp.ge.s32.totalorder %v686, %v696
        %vm698 = vcmp.ge.s32.totalorder %v687, %v696
        %vm699 = vcmp.ge.s32.totalorder %v688, %v696
        %vm700 = vcmp.ge.s32.totalorder %v689, %v696
        %vm701 = vcmp.ge.s32.totalorder %v690, %v696
        %vm702 = vcmp.ge.s32.totalorder %v691, %v696
        %vm703 = vcmp.ge.s32.totalorder %v692, %v696
        %vm704 = vcmp.ge.s32.totalorder %v693, %v696
        %v705 = vadd.s32 %v695, 1
        %v706 = vmul.u32 %v705, 8
        %vm707 = vcmp.lt.s32.totalorder %v686, %v706
        %vm708 = vcmp.lt.s32.totalorder %v687, %v706
        %vm709 = vcmp.lt.s32.totalorder %v688, %v706
        %vm710 = vcmp.lt.s32.totalorder %v689, %v706
        %vm711 = vcmp.lt.s32.totalorder %v690, %v706
        %vm712 = vcmp.lt.s32.totalorder %v691, %v706
        %vm713 = vcmp.lt.s32.totalorder %v692, %v706
        %vm714 = vcmp.lt.s32.totalorder %v693, %v706
        %vm715 = vmand %vm697, %vm707
        %vm716 = vmand %vm698, %vm708
        %vm717 = vmand %vm699, %vm709
        %vm718 = vmand %vm700, %vm710
        %vm719 = vmand %vm701, %vm711
        %vm720 = vmand %vm702, %vm712
        %vm721 = vmand %vm703, %vm713
        %vm722 = vmand %vm704, %vm714
        %v723 = vsel %vm715, 1, 0
        %v724 = vsel %vm716, 1, 0
        %v725 = vsel %vm717, 1, 0
        %v726 = vsel %vm718, 1, 0
        %v727 = vsel %vm719, 1, 0
        %v728 = vsel %vm720, 1, 0
        %v729 = vsel %vm721, 1, 0
        %v730 = vsel %vm722, 1, 0
        %v731 = vcvt.s32.f32 %v723
        %v732 = vcvt.s32.f32 %v724
        %v733 = vcvt.s32.f32 %v725
        %v734 = vcvt.s32.f32 %v726
        %v735 = vcvt.s32.f32 %v727
        %v736 = vcvt.s32.f32 %v728
        %v737 = vcvt.s32.f32 %v729
        %v738 = vcvt.s32.f32 %v730
        %v740 = vsel %vm453, %v731, 0
        %v743 = vsel %vm453, %v732, 0
        %v746 = vsel %vm453, %v733, 0
        %v749 = vsel %vm453, %v734, 0
        %v752 = vsel %vm453, %v735, 0
        %v755 = vsel %vm453, %v736, 0
        %v758 = vsel %vm453, %v737, 0
        %v761 = vsel %vm453, %v738, 0
        %763 = vmatprep.subr.mxu0 0.0
        %764 = vmatpush1.msra.mxu0 %v684
        %765 = vmatprep.subr.mxu0 0.0
        %766 = vmatpush1.msra.mxu0 0.0
        %767 = vmatprep.subr.mxu0 0.0
        %768 = vmatpush1.msra.mxu0 0.0
        %769 = vmatprep.subr.mxu0 0.0
        %770 = vmatpush1.msra.mxu0 0.0
        %771 = vmatprep.subr.mxu0 0.0
        %772 = vmatpush1.msra.mxu0 0.0
        %773 = vmatprep.subr.mxu0 0.0
        %774 = vmatpush1.msra.mxu0 0.0
        %775 = vmatprep.subr.mxu0 0.0
        %776 = vmatpush1.msra.mxu0 0.0
        %777 = vmatprep.subr.mxu0 0.0
        %778 = vmatpush1.msra.mxu0 0.0
        %779 = vmatprep.subr.mxu0 0.0
        %780 = vmatpush1.msra.mxu0 0.0
        %781 = vmatprep.subr.mxu0 0.0
        %782 = vmatpush1.msra.mxu0 0.0
        %783 = vmatprep.subr.mxu0 0.0
        %784 = vmatpush1.msra.mxu0 0.0
        %785 = vmatprep.subr.mxu0 0.0
        %786 = vmatpush1.msra.mxu0 0.0
        %787 = vmatprep.subr.mxu0 0.0
        %788 = vmatpush1.msra.mxu0 0.0
        %789 = vmatprep.subr.mxu0 0.0
        %790 = vmatpush1.msra.mxu0 0.0
        %791 = vmatprep.subr.mxu0 0.0
        %792 = vmatpush1.msra.mxu0 0.0
        %793 = vmatprep.subr.mxu0 0.0
        %794 = vmatpush1.msra.mxu0 0.0
        %795 = vmatprep.subr.mxu0 0.0
        %796 = vmatpush1.msra.mxu0 0.0
        %797 = vmatprep.subr.mxu0 0.0
        %798 = vmatpush1.msra.mxu0 0.0
        %799 = vmatprep.subr.mxu0 0.0
        %800 = vmatpush1.msra.mxu0 0.0
        %801 = vmatprep.subr.mxu0 0.0
        %802 = vmatpush1.msra.mxu0 0.0
        %803 = vmatprep.subr.mxu0 0.0
        %804 = vmatpush1.msra.mxu0 0.0
        %805 = vmatprep.subr.mxu0 0.0
        %806 = vmatpush1.msra.mxu0 0.0
        %807 = vmatprep.subr.mxu0 0.0
        %808 = vmatpush1.msra.mxu0 0.0
        %809 = vmatprep.subr.mxu0 0.0
        %810 = vmatpush1.msra.mxu0 0.0
        %811 = vmatprep.subr.mxu0 0.0
        %812 = vmatpush1.msra.mxu0 0.0
        %813 = vmatprep.subr.mxu0 0.0
        %814 = vmatpush1.msra.mxu0 0.0
        %815 = vmatprep.subr.mxu0 0.0
        %816 = vmatpush1.msra.mxu0 0.0
        %817 = vmatprep.subr.mxu0 0.0
        %818 = vmatpush1.msra.mxu0 0.0
        %819 = vmatprep.subr.mxu0 0.0
        %820 = vmatpush1.msra.mxu0 0.0
        %821 = vmatprep.subr.mxu0 0.0
        %822 = vmatpush1.msra.mxu0 0.0
        %823 = vmatprep.subr.mxu0 0.0
        %824 = vmatpush1.msra.mxu0 0.0
        %825 = vmatprep.subr.mxu0 0.0
        %826 = vmatpush1.msra.mxu0 0.0
        %827 = vmatprep.mubr.f32.mxu0 0.0
        %828 = vmatmul.mubr.f32.gmra.mrb[0].mxu0 %v740
        %v829 = vpop.f32.mrb[0].mxu0
        %v830 = vadd.f32 0.0, %v829
        %v831 = vpop.f32.mrb[0].mxu0
        %832 = vmatprep.mubr.f32.mxu0 0.0
        %833 = vmatmul.mubr.f32.gmra.mrb[0].mxu0 %v743
        %v834 = vpop.f32.mrb[0].mxu0
        %v835 = vadd.f32 0.0, %v834
        %v836 = vpop.f32.mrb[0].mxu0
        %837 = vmatprep.mubr.f32.mxu0 0.0
        %838 = vmatmul.mubr.f32.gmra.mrb[0].mxu0 %v746
        %v839 = vpop.f32.mrb[0].mxu0
        %v840 = vadd.f32 0.0, %v839
        %v841 = vpop.f32.mrb[0].mxu0
        %842 = vmatprep.mubr.f32.mxu0 0.0
        %843 = vmatmul.mubr.f32.gmra.mrb[0].mxu0 %v749
        %v844 = vpop.f32.mrb[0].mxu0
        %v845 = vadd.f32 0.0, %v844
        %v846 = vpop.f32.mrb[0].mxu0
        %847 = vmatprep.mubr.f32.mxu0 0.0
        %848 = vmatmul.mubr.f32.gmra.mrb[0].mxu0 %v752
        %v849 = vpop.f32.mrb[0].mxu0
        %v850 = vadd.f32 0.0, %v849
        %v851 = vpop.f32.mrb[0].mxu0
        %852 = vmatprep.mubr.f32.mxu0 0.0
        %853 = vmatmul.mubr.f32.gmra.mrb[0].mxu0 %v755
        %v854 = vpop.f32.mrb[0].mxu0
        %v855 = vadd.f32 0.0, %v854
        %v856 = vpop.f32.mrb[0].mxu0
        %857 = vmatprep.mubr.f32.mxu0 0.0
        %858 = vmatmul.mubr.f32.gmra.mrb[0].mxu0 %v758
        %v859 = vpop.f32.mrb[0].mxu0
        %v860 = vadd.f32 0.0, %v859
        %v861 = vpop.f32.mrb[0].mxu0
        %862 = vmatprep.mubr.f32.mxu0 0.0
        %863 = vmatmul.mubr.f32.gmra.mrb[0].mxu0 %v761
        %v864 = vpop.f32.mrb[0].mxu0
        %v865 = vadd.f32 0.0, %v864
        %v866 = vpop.f32.mrb[0].mxu0
        %867 = vdwg.mxu0
        %vm868 = vcmp.eq.s32.totalorder %v686, %v695
        %vm869 = vcmp.eq.s32.totalorder %v687, %v695
        %vm870 = vcmp.eq.s32.totalorder %v688, %v695
        %vm871 = vcmp.eq.s32.totalorder %v689, %v695
        %vm872 = vcmp.eq.s32.totalorder %v690, %v695
        %vm873 = vcmp.eq.s32.totalorder %v691, %v695
        %vm874 = vcmp.eq.s32.totalorder %v692, %v695
        %vm875 = vcmp.eq.s32.totalorder %v693, %v695
        %v876 = vsel %vm868, 1, 0
        %v877 = vsel %vm869, 1, 0
        %v878 = vsel %vm870, 1, 0
        %v879 = vsel %vm871, 1, 0
        %v880 = vsel %vm872, 1, 0
        %v881 = vsel %vm873, 1, 0
        %v882 = vsel %vm874, 1, 0
        %v883 = vsel %vm875, 1, 0
        %v884 = vcvt.s32.f32 %v876
        %v885 = vcvt.s32.f32 %v877
        %v886 = vcvt.s32.f32 %v878
        %v887 = vcvt.s32.f32 %v879
        %v888 = vcvt.s32.f32 %v880
        %v889 = vcvt.s32.f32 %v881
        %v890 = vcvt.s32.f32 %v882
        %v891 = vcvt.s32.f32 %v883
        %v893 = vsel %vm409, %v367, 0
        %v896 = vsel %vm409, %v370, 0
        %v899 = vsel %vm409, %v375, 0
        %v902 = vsel %vm409, %v378, 0
        %v905 = vsel %vm409, %v383, 0
        %v908 = vsel %vm409, %v386, 0
        %v911 = vsel %vm409, %v391, 0
        %v914 = vsel %vm409, %v394, 0
        %v917 = vsel %vm409, %v256, 0
        %919 = vmatprep.subr.mxu0 0.0
        %920 = vmatpush1.xpose.msra.mxu0 %v917
        %921 = vmatprep.subr.mxu0 0.0
        %922 = vmatpush1.xpose.msra.mxu0 0.0
        %923 = vmatprep.subr.mxu0 0.0
        %924 = vmatpush1.xpose.msra.mxu0 0.0
        %925 = vmatprep.subr.mxu0 0.0
        %926 = vmatpush1.xpose.msra.mxu0 0.0
        %927 = vmatprep.subr.mxu0 0.0
        %928 = vmatpush1.xpose.msra.mxu0 0.0
        %929 = vmatprep.subr.mxu0 0.0
        %930 = vmatpush1.xpose.msra.mxu0 0.0
        %931 = vmatprep.subr.mxu0 0.0
        %932 = vmatpush1.xpose.msra.mxu0 0.0
        %933 = vmatprep.subr.mxu0 0.0
        %934 = vmatpush1.xpose.msra.mxu0 0.0
        %935 = vmatprep.subr.mxu0 0.0
        %936 = vmatpush1.xpose.msra.mxu0 0.0
        %937 = vmatprep.subr.mxu0 0.0
        %938 = vmatpush1.xpose.msra.mxu0 0.0
        %939 = vmatprep.subr.mxu0 0.0
        %940 = vmatpush1.xpose.msra.mxu0 0.0
        %941 = vmatprep.subr.mxu0 0.0
        %942 = vmatpush1.xpose.msra.mxu0 0.0
        %943 = vmatprep.subr.mxu0 0.0
        %944 = vmatpush1.xpose.msra.mxu0 0.0
        %945 = vmatprep.subr.mxu0 0.0
        %946 = vmatpush1.xpose.msra.mxu0 0.0
        %947 = vmatprep.subr.mxu0 0.0
        %948 = vmatpush1.xpose.msra.mxu0 0.0
        %949 = vmatprep.subr.mxu0 0.0
        %950 = vmatpush1.xpose.msra.mxu0 0.0
        %951 = vmatprep.subr.mxu0 0.0
        %952 = vmatpush1.xpose.msra.mxu0 0.0
        %953 = vmatprep.subr.mxu0 0.0
        %954 = vmatpush1.xpose.msra.mxu0 0.0
        %955 = vmatprep.subr.mxu0 0.0
        %956 = vmatpush1.xpose.msra.mxu0 0.0
        %957 = vmatprep.subr.mxu0 0.0
        %958 = vmatpush1.xpose.msra.mxu0 0.0
        %959 = vmatprep.subr.mxu0 0.0
        %960 = vmatpush1.xpose.msra.mxu0 0.0
        %961 = vmatprep.subr.mxu0 0.0
        %962 = vmatpush1.xpose.msra.mxu0 0.0
        %963 = vmatprep.subr.mxu0 0.0
        %964 = vmatpush1.xpose.msra.mxu0 0.0
        %965 = vmatprep.subr.mxu0 0.0
        %966 = vmatpush1.xpose.msra.mxu0 0.0
        %967 = vmatprep.subr.mxu0 0.0
        %968 = vmatpush1.xpose.msra.mxu0 0.0
        %969 = vmatprep.subr.mxu0 0.0
        %970 = vmatpush1.xpose.msra.mxu0 0.0
        %971 = vmatprep.subr.mxu0 0.0
        %972 = vmatpush1.xpose.msra.mxu0 0.0
        %973 = vmatprep.subr.mxu0 0.0
        %974 = vmatpush1.xpose.msra.mxu0 0.0
        %975 = vmatprep.subr.mxu0 0.0
        %976 = vmatpush1.xpose.msra.mxu0 0.0
        %977 = vmatprep.subr.mxu0 0.0
        %978 = vmatpush1.xpose.msra.mxu0 0.0
        %979 = vmatprep.subr.mxu0 0.0
        %980 = vmatpush1.xpose.msra.mxu0 0.0
        %981 = vmatprep.subr.mxu0 0.0
        %982 = vmatpush1.xpose.msra.mxu0 0.0
        %983 = vmatprep.mubr.f32.mxu0 0.0
        %984 = vmatmul.mubr.f32.gmra.mrb[0].mxu0 %v893
        %v985 = vpop.f32.mrb[0].mxu0
        %v986 = vadd.f32 0.0, %v985
        %v987 = vpop.f32.mrb[0].mxu0
        %988 = vmatprep.mubr.f32.mxu0 0.0
        %989 = vmatmul.mubr.f32.gmra.mrb[0].mxu0 %v896
        %v990 = vpop.f32.mrb[0].mxu0
        %v991 = vadd.f32 0.0, %v990
        %v992 = vpop.f32.mrb[0].mxu0
        %993 = vmatprep.mubr.f32.mxu0 0.0
        %994 = vmatmul.mubr.f32.gmra.mrb[0].mxu0 %v899
        %v995 = vpop.f32.mrb[0].mxu0
        %v996 = vadd.f32 0.0, %v995
        %v997 = vpop.f32.mrb[0].mxu0
        %998 = vmatprep.mubr.f32.mxu0 0.0
        %999 = vmatmul.mubr.f32.gmra.mrb[0].mxu0 %v902
        %v1000 = vpop.f32.mrb[0].mxu0
        %v1001 = vadd.f32 0.0, %v1000
        %v1002 = vpop.f32.mrb[0].mxu0
        %1003 = vmatprep.mubr.f32.mxu0 0.0
        %1004 = vmatmul.mubr.f32.gmra.mrb[0].mxu0 %v905
        %v1005 = vpop.f32.mrb[0].mxu0
        %v1006 = vadd.f32 0.0, %v1005
        %v1007 = vpop.f32.mrb[0].mxu0
        %1008 = vmatprep.mubr.f32.mxu0 0.0
        %1009 = vmatmul.mubr.f32.gmra.mrb[0].mxu0 %v908
        %v1010 = vpop.f32.mrb[0].mxu0
        %v1011 = vadd.f32 0.0, %v1010
        %v1012 = vpop.f32.mrb[0].mxu0
        %1013 = vmatprep.mubr.f32.mxu0 0.0
        %1014 = vmatmul.mubr.f32.gmra.mrb[0].mxu0 %v911
        %v1015 = vpop.f32.mrb[0].mxu0
        %v1016 = vadd.f32 0.0, %v1015
        %v1017 = vpop.f32.mrb[0].mxu0
        %1018 = vmatprep.mubr.f32.mxu0 0.0
        %1019 = vmatmul.mubr.f32.gmra.mrb[0].mxu0 %v914
        %v1020 = vpop.f32.mrb[0].mxu0
        %v1021 = vadd.f32 0.0, %v1020
        %v1022 = vpop.f32.mrb[0].mxu0
        %1023 = vdwg.mxu0
        %1025 = vset.pattern.permute.xlu0 2
        %1026 = vperm.xlu0 %1025, %v986
        %v1027 = vpop.permute.xlu0 %1026
        %1030 = vset.pattern.permute.xlu0 2
        %1031 = vperm.xlu0 %1030, %v991
        %v1032 = vpop.permute.xlu0 %1031
        %1035 = vset.pattern.permute.xlu0 2
        %1036 = vperm.xlu0 %1035, %v996
        %v1037 = vpop.permute.xlu0 %1036
        %1040 = vset.pattern.permute.xlu0 2
        %1041 = vperm.xlu0 %1040, %v1001
        %v1042 = vpop.permute.xlu0 %1041
        %1045 = vset.pattern.permute.xlu0 2
        %1046 = vperm.xlu0 %1045, %v1006
        %v1047 = vpop.permute.xlu0 %1046
        %1050 = vset.pattern.permute.xlu0 2
        %1051 = vperm.xlu0 %1050, %v1011
        %v1052 = vpop.permute.xlu0 %1051
        %1055 = vset.pattern.permute.xlu0 2
        %1056 = vperm.xlu0 %1055, %v1016
        %v1057 = vpop.permute.xlu0 %1056
        %1060 = vset.pattern.permute.xlu0 2
        %1061 = vperm.xlu0 %1060, %v1021
        %v1062 = vpop.permute.xlu0 %1061
        %v1064 = vmul.f32 %v884, %v1027
        %v1065 = vmul.f32 %v885, %v1032
        %v1066 = vmul.f32 %v886, %v1037
        %v1067 = vmul.f32 %v887, %v1042
        %v1068 = vmul.f32 %v888, %v1047
        %v1069 = vmul.f32 %v889, %v1052
        %v1070 = vmul.f32 %v890, %v1057
        %v1071 = vmul.f32 %v891, %v1062
        %vm1072 = vcmask 523264
        %v1073 = vsel %vm1072, %v1064, 0.0
        %v1074 = vsel %vm1072, %v1065, 0.0
        %v1075 = vadd.f32 %v1073, %v1074
        %v1076 = vsel %vm1072, %v1066, 0.0
        %v1077 = vadd.f32 %v1075, %v1076
        %v1078 = vsel %vm1072, %v1067, 0.0
        %v1079 = vadd.f32 %v1077, %v1078
        %v1080 = vsel %vm1072, %v1068, 0.0
        %v1081 = vadd.f32 %v1079, %v1080
        %v1082 = vsel %vm1072, %v1069, 0.0
        %v1083 = vadd.f32 %v1081, %v1082
        %v1084 = vsel %vm1072, %v1070, 0.0
        %v1085 = vadd.f32 %v1083, %v1084
        %v1086 = vsel %vm1072, %v1071, 0.0
        %v1087 = vadd.f32 %v1085, %v1086
        %v1088 = vrot.slane %v1087, 4
        %v1089 = vadd.f32 %v1087, %v1088
        %v1090 = vrot.slane %v1089, 2
        %v1091 = vadd.f32 %v1089, %v1090
        %v1092 = vrot.slane %v1091, 1
        %v1093 = vadd.f32 %v1091, %v1092
        %1094 = vset.pattern.permute.xlu0 0
        %1095 = vperm.xlu0 %1094, %v986
        %v1096 = vpop.permute.xlu0 %1095
        %1098 = vset.pattern.permute.xlu0 0
        %1099 = vperm.xlu0 %1098, %v991
        %v1100 = vpop.permute.xlu0 %1099
        %1102 = vset.pattern.permute.xlu0 0
        %1103 = vperm.xlu0 %1102, %v996
        %v1104 = vpop.permute.xlu0 %1103
        %1106 = vset.pattern.permute.xlu0 0
        %1107 = vperm.xlu0 %1106, %v1001
        %v1108 = vpop.permute.xlu0 %1107
        %1110 = vset.pattern.permute.xlu0 0
        %1111 = vperm.xlu0 %1110, %v1006
        %v1112 = vpop.permute.xlu0 %1111
        %1114 = vset.pattern.permute.xlu0 0
        %1115 = vperm.xlu0 %1114, %v1011
        %v1116 = vpop.permute.xlu0 %1115
        %1118 = vset.pattern.permute.xlu0 0
        %1119 = vperm.xlu0 %1118, %v1016
        %v1120 = vpop.permute.xlu0 %1119
        %1122 = vset.pattern.permute.xlu0 0
        %1123 = vperm.xlu0 %1122, %v1021
        %v1124 = vpop.permute.xlu0 %1123
        %v1126 = vadd.f32 %v1096, %v1093
        %v1127 = vadd.f32 %v1100, %v1093
        %v1128 = vadd.f32 %v1104, %v1093
        %v1129 = vadd.f32 %v1108, %v1093
        %v1130 = vadd.f32 %v1112, %v1093
        %v1131 = vadd.f32 %v1116, %v1093
        %v1132 = vadd.f32 %v1120, %v1093
        %v1133 = vadd.f32 %v1124, %v1093
        %s1135 = vtos %v259
        %v1136 = vstv %s1135
        %v1138 = vadd.f32 %v1126, %v1136
        %v1139 = vadd.f32 %v1127, %v1136
        %v1140 = vadd.f32 %v1128, %v1136
        %v1141 = vadd.f32 %v1129, %v1136
        %v1142 = vadd.f32 %v1130, %v1136
        %v1143 = vadd.f32 %v1131, %v1136
        %v1144 = vadd.f32 %v1132, %v1136
        %v1145 = vadd.f32 %v1133, %v1136
        %v1146 = vtanh.pop %v1138
        %v1147 = vtanh.pop %v1139
        %v1148 = vtanh.pop %v1140
        %v1149 = vtanh.pop %v1141
        %v1150 = vtanh.pop %v1142
        %v1151 = vtanh.pop %v1143
        %v1152 = vtanh.pop %v1144
        %v1153 = vtanh.pop %v1145
        %v1154 = vmul.f32 %v206, %v1146
        %v1155 = vmul.f32 %v207, %v1147
        %v1156 = vmul.f32 %v208, %v1148
        %v1157 = vmul.f32 %v209, %v1149
        %v1158 = vmul.f32 %v210, %v1150
        %v1159 = vmul.f32 %v211, %v1151
        %v1160 = vmul.f32 %v212, %v1152
        %v1161 = vmul.f32 %v213, %v1153
        %v1163 = vsel %vm1072, %v1154, 0
        %v1166 = vsel %vm1072, %v1155, 0
        %v1169 = vsel %vm1072, %v1156, 0
        %v1172 = vsel %vm1072, %v1157, 0
        %v1175 = vsel %vm1072, %v1158, 0
        %v1178 = vsel %vm1072, %v1159, 0
        %v1181 = vsel %vm1072, %v1160, 0
        %v1184 = vsel %vm1072, %v1161, 0
        %1186 = vmatprep.subr.mxu0 0.0
        %1187 = vmatpush1.msra.mxu0 %v367
        %1188 = vmatprep.subr.mxu0 0.0
        %1189 = vmatpush1.msra.mxu0 %v370
        %1190 = vmatprep.subr.mxu0 0.0
        %1191 = vmatpush1.msra.mxu0 %v375
        %1192 = vmatprep.subr.mxu0 0.0
        %1193 = vmatpush1.msra.mxu0 %v378
        %1194 = vmatprep.subr.mxu0 0.0
        %1195 = vmatpush1.msra.mxu0 %v383
        %1196 = vmatprep.subr.mxu0 0.0
        %1197 = vmatpush1.msra.mxu0 %v386
        %1198 = vmatprep.subr.mxu0 0.0
        %1199 = vmatpush1.msra.mxu0 %v391
        %1200 = vmatprep.subr.mxu0 0.0
        %1201 = vmatpush1.msra.mxu0 %v394
        %1202 = vmatprep.subr.mxu0 0.0
        %1203 = vmatpush1.msra.mxu0 0.0
        %1204 = vmatprep.subr.mxu0 0.0
        %1205 = vmatpush1.msra.mxu0 0.0
        %1206 = vmatprep.subr.mxu0 0.0
        %1207 = vmatpush1.msra.mxu0 0.0
        %1208 = vmatprep.subr.mxu0 0.0
        %1209 = vmatpush1.msra.mxu0 0.0
        %1210 = vmatprep.subr.mxu0 0.0
        %1211 = vmatpush1.msra.mxu0 0.0
        %1212 = vmatprep.subr.mxu0 0.0
        %1213 = vmatpush1.msra.mxu0 0.0
        %1214 = vmatprep.subr.mxu0 0.0
        %1215 = vmatpush1.msra.mxu0 0.0
        %1216 = vmatprep.subr.mxu0 0.0
        %1217 = vmatpush1.msra.mxu0 0.0
        %1218 = vmatprep.subr.mxu0 0.0
        %1219 = vmatpush1.msra.mxu0 0.0
        %1220 = vmatprep.subr.mxu0 0.0
        %1221 = vmatpush1.msra.mxu0 0.0
        %1222 = vmatprep.subr.mxu0 0.0
        %1223 = vmatpush1.msra.mxu0 0.0
        %1224 = vmatprep.subr.mxu0 0.0
        %1225 = vmatpush1.msra.mxu0 0.0
        %1226 = vmatprep.subr.mxu0 0.0
        %1227 = vmatpush1.msra.mxu0 0.0
        %1228 = vmatprep.subr.mxu0 0.0
        %1229 = vmatpush1.msra.mxu0 0.0
        %1230 = vmatprep.subr.mxu0 0.0
        %1231 = vmatpush1.msra.mxu0 0.0
        %1232 = vmatprep.subr.mxu0 0.0
        %1233 = vmatpush1.msra.mxu0 0.0
        %1234 = vmatprep.subr.mxu0 0.0
        %1235 = vmatpush1.msra.mxu0 0.0
        %1236 = vmatprep.subr.mxu0 0.0
        %1237 = vmatpush1.msra.mxu0 0.0
        %1238 = vmatprep.subr.mxu0 0.0
        %1239 = vmatpush1.msra.mxu0 0.0
        %1240 = vmatprep.subr.mxu0 0.0
        %1241 = vmatpush1.msra.mxu0 0.0
        %1242 = vmatprep.subr.mxu0 0.0
        %1243 = vmatpush1.msra.mxu0 0.0
        %1244 = vmatprep.subr.mxu0 0.0
        %1245 = vmatpush1.msra.mxu0 0.0
        %1246 = vmatprep.subr.mxu0 0.0
        %1247 = vmatpush1.msra.mxu0 0.0
        %1248 = vmatprep.subr.mxu0 0.0
        %1249 = vmatpush1.msra.mxu0 0.0
        %1250 = vmatprep.mubr.f32.mxu0 0.0
        %1251 = vmatmul.mubr.f32.gmra.mrb[0].mxu0 %v1163
        %v1252 = vpop.f32.mrb[0].mxu0
        %v1253 = vadd.f32 0.0, %v1252
        %v1254 = vpop.f32.mrb[0].mxu0
        %1255 = vmatprep.mubr.f32.mxu0 0.0
        %1256 = vmatmul.mubr.f32.gmra.mrb[0].mxu0 %v1166
        %v1257 = vpop.f32.mrb[0].mxu0
        %v1258 = vadd.f32 0.0, %v1257
        %v1259 = vpop.f32.mrb[0].mxu0
        %1260 = vmatprep.mubr.f32.mxu0 0.0
        %1261 = vmatmul.mubr.f32.gmra.mrb[0].mxu0 %v1169
        %v1262 = vpop.f32.mrb[0].mxu0
        %v1263 = vadd.f32 0.0, %v1262
        %v1264 = vpop.f32.mrb[0].mxu0
        %1265 = vmatprep.mubr.f32.mxu0 0.0
        %1266 = vmatmul.mubr.f32.gmra.mrb[0].mxu0 %v1172
        %v1267 = vpop.f32.mrb[0].mxu0
        %v1268 = vadd.f32 0.0, %v1267
        %v1269 = vpop.f32.mrb[0].mxu0
        %1270 = vmatprep.mubr.f32.mxu0 0.0
        %1271 = vmatmul.mubr.f32.gmra.mrb[0].mxu0 %v1175
        %v1272 = vpop.f32.mrb[0].mxu0
        %v1273 = vadd.f32 0.0, %v1272
        %v1274 = vpop.f32.mrb[0].mxu0
        %1275 = vmatprep.mubr.f32.mxu0 0.0
        %1276 = vmatmul.mubr.f32.gmra.mrb[0].mxu0 %v1178
        %v1277 = vpop.f32.mrb[0].mxu0
        %v1278 = vadd.f32 0.0, %v1277
        %v1279 = vpop.f32.mrb[0].mxu0
        %1280 = vmatprep.mubr.f32.mxu0 0.0
        %1281 = vmatmul.mubr.f32.gmra.mrb[0].mxu0 %v1181
        %v1282 = vpop.f32.mrb[0].mxu0
        %v1283 = vadd.f32 0.0, %v1282
        %v1284 = vpop.f32.mrb[0].mxu0
        %1285 = vmatprep.mubr.f32.mxu0 0.0
        %1286 = vmatmul.mubr.f32.gmra.mrb[0].mxu0 %v1184
        %v1287 = vpop.f32.mrb[0].mxu0
        %v1288 = vadd.f32 0.0, %v1287
        %v1289 = vpop.f32.mrb[0].mxu0
        %1290 = vdwg.mxu0
        %v1291 = vmul.f32 %v367, 0.3
        %v1292 = vmul.f32 %v370, 0.3
        %v1293 = vmul.f32 %v375, 0.3
        %v1294 = vmul.f32 %v378, 0.3
        %v1295 = vmul.f32 %v383, 0.3
        %v1296 = vmul.f32 %v386, 0.3
        %v1297 = vmul.f32 %v391, 0.3
        %v1298 = vmul.f32 %v394, 0.3
        %v1299 = vmul.f32 %v830, %v1253
        %v1300 = vmul.f32 %v835, %v1258
        %v1301 = vmul.f32 %v840, %v1263
        %v1302 = vmul.f32 %v845, %v1268
        %v1303 = vmul.f32 %v850, %v1273
        %v1304 = vmul.f32 %v855, %v1278
        %v1305 = vmul.f32 %v860, %v1283
        %v1306 = vmul.f32 %v865, %v1288
        %v1307 = vadd.f32 %v1291, %v1299
        %v1308 = vadd.f32 %v1292, %v1300
        %v1309 = vadd.f32 %v1293, %v1301
        %v1310 = vadd.f32 %v1294, %v1302
        %v1311 = vadd.f32 %v1295, %v1303
        %v1312 = vadd.f32 %v1296, %v1304
        %v1313 = vadd.f32 %v1297, %v1305
        %v1314 = vadd.f32 %v1298, %v1306
        %v1315 = vmax.f32 %v1307, 0.0
        %v1316 = vmax.f32 %v1308, 0.0
        %v1317 = vmax.f32 %v1309, 0.0
        %v1318 = vmax.f32 %v1310, 0.0
        %v1319 = vmax.f32 %v1311, 0.0
        %v1320 = vmax.f32 %v1312, 0.0
        %v1321 = vmax.f32 %v1313, 0.0
        %v1322 = vmax.f32 %v1314, 0.0
        %v1324 = vsel %vm409, %v1315, 0
        %v1327 = vsel %vm409, %v1316, 0
        %v1330 = vsel %vm409, %v1317, 0
        %v1333 = vsel %vm409, %v1318, 0
        %v1336 = vsel %vm409, %v1319, 0
        %v1339 = vsel %vm409, %v1320, 0
        %v1342 = vsel %vm409, %v1321, 0
        %v1345 = vsel %vm409, %v1322, 0
        %1347 = vmatprep.subr.mxu0 0.0
        %1348 = vmatpush1.xpose.msra.mxu0 %v917
        %1349 = vmatprep.subr.mxu0 0.0
        %1350 = vmatpush1.xpose.msra.mxu0 0.0
        %1351 = vmatprep.subr.mxu0 0.0
        %1352 = vmatpush1.xpose.msra.mxu0 0.0
        %1353 = vmatprep.subr.mxu0 0.0
        %1354 = vmatpush1.xpose.msra.mxu0 0.0
        %1355 = vmatprep.subr.mxu0 0.0
        %1356 = vmatpush1.xpose.msra.mxu0 0.0
        %1357 = vmatprep.subr.mxu0 0.0
        %1358 = vmatpush1.xpose.msra.mxu0 0.0
        %1359 = vmatprep.subr.mxu0 0.0
        %1360 = vmatpush1.xpose.msra.mxu0 0.0
        %1361 = vmatprep.subr.mxu0 0.0
        %1362 = vmatpush1.xpose.msra.mxu0 0.0
        %1363 = vmatprep.subr.mxu0 0.0
        %1364 = vmatpush1.xpose.msra.mxu0 0.0
        %1365 = vmatprep.subr.mxu0 0.0
        %1366 = vmatpush1.xpose.msra.mxu0 0.0
        %1367 = vmatprep.subr.mxu0 0.0
        %1368 = vmatpush1.xpose.msra.mxu0 0.0
        %1369 = vmatprep.subr.mxu0 0.0
        %1370 = vmatpush1.xpose.msra.mxu0 0.0
        %1371 = vmatprep.subr.mxu0 0.0
        %1372 = vmatpush1.xpose.msra.mxu0 0.0
        %1373 = vmatprep.subr.mxu0 0.0
        %1374 = vmatpush1.xpose.msra.mxu0 0.0
        %1375 = vmatprep.subr.mxu0 0.0
        %1376 = vmatpush1.xpose.msra.mxu0 0.0
        %1377 = vmatprep.subr.mxu0 0.0
        %1378 = vmatpush1.xpose.msra.mxu0 0.0
        %1379 = vmatprep.subr.mxu0 0.0
        %1380 = vmatpush1.xpose.msra.mxu0 0.0
        %1381 = vmatprep.subr.mxu0 0.0
        %1382 = vmatpush1.xpose.msra.mxu0 0.0
        %1383 = vmatprep.subr.mxu0 0.0
        %1384 = vmatpush1.xpose.msra.mxu0 0.0
        %1385 = vmatprep.subr.mxu0 0.0
        %1386 = vmatpush1.xpose.msra.mxu0 0.0
        %1387 = vmatprep.subr.mxu0 0.0
        %1388 = vmatpush1.xpose.msra.mxu0 0.0
        %1389 = vmatprep.subr.mxu0 0.0
        %1390 = vmatpush1.xpose.msra.mxu0 0.0
        %1391 = vmatprep.subr.mxu0 0.0
        %1392 = vmatpush1.xpose.msra.mxu0 0.0
        %1393 = vmatprep.subr.mxu0 0.0
        %1394 = vmatpush1.xpose.msra.mxu0 0.0
        %1395 = vmatprep.subr.mxu0 0.0
        %1396 = vmatpush1.xpose.msra.mxu0 0.0
        %1397 = vmatprep.subr.mxu0 0.0
        %1398 = vmatpush1.xpose.msra.mxu0 0.0
        %1399 = vmatprep.subr.mxu0 0.0
        %1400 = vmatpush1.xpose.msra.mxu0 0.0
        %1401 = vmatprep.subr.mxu0 0.0
        %1402 = vmatpush1.xpose.msra.mxu0 0.0
        %1403 = vmatprep.subr.mxu0 0.0
        %1404 = vmatpush1.xpose.msra.mxu0 0.0
        %1405 = vmatprep.subr.mxu0 0.0
        %1406 = vmatpush1.xpose.msra.mxu0 0.0
        %1407 = vmatprep.subr.mxu0 0.0
        %1408 = vmatpush1.xpose.msra.mxu0 0.0
        %1409 = vmatprep.subr.mxu0 0.0
        %1410 = vmatpush1.xpose.msra.mxu0 0.0
        %1411 = vmatprep.mubr.f32.mxu0 0.0
        %1412 = vmatmul.mubr.f32.gmra.mrb[0].mxu0 %v1324
        %v1413 = vpop.f32.mrb[0].mxu0
        %v1414 = vadd.f32 0.0, %v1413
        %v1415 = vpop.f32.mrb[0].mxu0
        %1416 = vmatprep.mubr.f32.mxu0 0.0
        %1417 = vmatmul.mubr.f32.gmra.mrb[0].mxu0 %v1327
        %v1418 = vpop.f32.mrb[0].mxu0
        %v1419 = vadd.f32 0.0, %v1418
        %v1420 = vpop.f32.mrb[0].mxu0
        %1421 = vmatprep.mubr.f32.mxu0 0.0
        %1422 = vmatmul.mubr.f32.gmra.mrb[0].mxu0 %v1330
        %v1423 = vpop.f32.mrb[0].mxu0
        %v1424 = vadd.f32 0.0, %v1423
        %v1425 = vpop.f32.mrb[0].mxu0
        %1426 = vmatprep.mubr.f32.mxu0 0.0
        %1427 = vmatmul.mubr.f32.gmra.mrb[0].mxu0 %v1333
        %v1428 = vpop.f32.mrb[0].mxu0
        %v1429 = vadd.f32 0.0, %v1428
        %v1430 = vpop.f32.mrb[0].mxu0
        %1431 = vmatprep.mubr.f32.mxu0 0.0
        %1432 = vmatmul.mubr.f32.gmra.mrb[0].mxu0 %v1336
        %v1433 = vpop.f32.mrb[0].mxu0
        %v1434 = vadd.f32 0.0, %v1433
        %v1435 = vpop.f32.mrb[0].mxu0
        %1436 = vmatprep.mubr.f32.mxu0 0.0
        %1437 = vmatmul.mubr.f32.gmra.mrb[0].mxu0 %v1339
        %v1438 = vpop.f32.mrb[0].mxu0
        %v1439 = vadd.f32 0.0, %v1438
        %v1440 = vpop.f32.mrb[0].mxu0
        %1441 = vmatprep.mubr.f32.mxu0 0.0
        %1442 = vmatmul.mubr.f32.gmra.mrb[0].mxu0 %v1342
        %v1443 = vpop.f32.mrb[0].mxu0
        %v1444 = vadd.f32 0.0, %v1443
        %v1445 = vpop.f32.mrb[0].mxu0
        %1446 = vmatprep.mubr.f32.mxu0 0.0
        %1447 = vmatmul.mubr.f32.gmra.mrb[0].mxu0 %v1345
        %v1448 = vpop.f32.mrb[0].mxu0
        %v1449 = vadd.f32 0.0, %v1448
        %v1450 = vpop.f32.mrb[0].mxu0
        %1451 = vdwg.mxu0
        %1453 = vset.pattern.permute.xlu0 3
        %1454 = vperm.xlu0 %1453, %v1414
        %v1455 = vpop.permute.xlu0 %1454
        %1458 = vset.pattern.permute.xlu0 3
        %1459 = vperm.xlu0 %1458, %v1419
        %v1460 = vpop.permute.xlu0 %1459
        %1463 = vset.pattern.permute.xlu0 3
        %1464 = vperm.xlu0 %1463, %v1424
        %v1465 = vpop.permute.xlu0 %1464
        %1468 = vset.pattern.permute.xlu0 3
        %1469 = vperm.xlu0 %1468, %v1429
        %v1470 = vpop.permute.xlu0 %1469
        %1473 = vset.pattern.permute.xlu0 3
        %1474 = vperm.xlu0 %1473, %v1434
        %v1475 = vpop.permute.xlu0 %1474
        %1478 = vset.pattern.permute.xlu0 3
        %1479 = vperm.xlu0 %1478, %v1439
        %v1480 = vpop.permute.xlu0 %1479
        %1483 = vset.pattern.permute.xlu0 3
        %1484 = vperm.xlu0 %1483, %v1444
        %v1485 = vpop.permute.xlu0 %1484
        %1488 = vset.pattern.permute.xlu0 3
        %1489 = vperm.xlu0 %1488, %v1449
        %v1490 = vpop.permute.xlu0 %1489
        %v1492 = vmul.f32 %v884, %v1455
        %v1493 = vmul.f32 %v885, %v1460
        %v1494 = vmul.f32 %v886, %v1465
        %v1495 = vmul.f32 %v887, %v1470
        %v1496 = vmul.f32 %v888, %v1475
        %v1497 = vmul.f32 %v889, %v1480
        %v1498 = vmul.f32 %v890, %v1485
        %v1499 = vmul.f32 %v891, %v1490
        %v1500 = vsel %vm1072, %v1492, 0.0
        %v1501 = vsel %vm1072, %v1493, 0.0
        %v1502 = vadd.f32 %v1500, %v1501
        %v1503 = vsel %vm1072, %v1494, 0.0
        %v1504 = vadd.f32 %v1502, %v1503
        %v1505 = vsel %vm1072, %v1495, 0.0
        %v1506 = vadd.f32 %v1504, %v1505
        %v1507 = vsel %vm1072, %v1496, 0.0
        %v1508 = vadd.f32 %v1506, %v1507
        %v1509 = vsel %vm1072, %v1497, 0.0
        %v1510 = vadd.f32 %v1508, %v1509
        %v1511 = vsel %vm1072, %v1498, 0.0
        %v1512 = vadd.f32 %v1510, %v1511
        %v1513 = vsel %vm1072, %v1499, 0.0
        %v1514 = vadd.f32 %v1512, %v1513
        %v1515 = vrot.slane %v1514, 4
        %v1516 = vadd.f32 %v1514, %v1515
        %v1517 = vrot.slane %v1516, 2
        %v1518 = vadd.f32 %v1516, %v1517
        %v1519 = vrot.slane %v1518, 1
        %v1520 = vadd.f32 %v1518, %v1519
        %1521 = vset.pattern.permute.xlu0 1
        %1522 = vperm.xlu0 %1521, %v1414
        %v1523 = vpop.permute.xlu0 %1522
        %1525 = vset.pattern.permute.xlu0 1
        %1526 = vperm.xlu0 %1525, %v1419
        %v1527 = vpop.permute.xlu0 %1526
        %1529 = vset.pattern.permute.xlu0 1
        %1530 = vperm.xlu0 %1529, %v1424
        %v1531 = vpop.permute.xlu0 %1530
        %1533 = vset.pattern.permute.xlu0 1
        %1534 = vperm.xlu0 %1533, %v1429
        %v1535 = vpop.permute.xlu0 %1534
        %1537 = vset.pattern.permute.xlu0 1
        %1538 = vperm.xlu0 %1537, %v1434
        %v1539 = vpop.permute.xlu0 %1538
        %1541 = vset.pattern.permute.xlu0 1
        %1542 = vperm.xlu0 %1541, %v1439
        %v1543 = vpop.permute.xlu0 %1542
        %1545 = vset.pattern.permute.xlu0 1
        %1546 = vperm.xlu0 %1545, %v1444
        %v1547 = vpop.permute.xlu0 %1546
        %1549 = vset.pattern.permute.xlu0 1
        %1550 = vperm.xlu0 %1549, %v1449
        %v1551 = vpop.permute.xlu0 %1550
        %v1553 = vadd.f32 %v1523, %v1520
        %v1554 = vadd.f32 %v1527, %v1520
        %v1555 = vadd.f32 %v1531, %v1520
        %v1556 = vadd.f32 %v1535, %v1520
        %v1557 = vadd.f32 %v1539, %v1520
        %v1558 = vadd.f32 %v1543, %v1520
        %v1559 = vadd.f32 %v1547, %v1520
        %v1560 = vadd.f32 %v1551, %v1520
        %1561 = vrot.lane.b32.xlu0 %v259, 127
        %v1562 = vpop.permute.xlu0 %1561
        %s1563 = vtos %v1562
        %v1564 = vstv %s1563
        %v1566 = vadd.f32 %v1553, %v1564
        %v1567 = vadd.f32 %v1554, %v1564
        %v1568 = vadd.f32 %v1555, %v1564
        %v1569 = vadd.f32 %v1556, %v1564
        %v1570 = vadd.f32 %v1557, %v1564
        %v1571 = vadd.f32 %v1558, %v1564
        %v1572 = vadd.f32 %v1559, %v1564
        %v1573 = vadd.f32 %v1560, %v1564
        %v1574 = vtanh.pop %v1566
        %v1575 = vtanh.pop %v1567
        %v1576 = vtanh.pop %v1568
        %v1577 = vtanh.pop %v1569
        %v1578 = vtanh.pop %v1570
        %v1579 = vtanh.pop %v1571
        %v1580 = vtanh.pop %v1572
        %v1581 = vtanh.pop %v1573
        %v1582 = vmul.f32 %v206, %v1574
        %v1583 = vmul.f32 %v207, %v1575
        %v1584 = vmul.f32 %v208, %v1576
        %v1585 = vmul.f32 %v209, %v1577
        %v1586 = vmul.f32 %v210, %v1578
        %v1587 = vmul.f32 %v211, %v1579
        %v1588 = vmul.f32 %v212, %v1580
        %v1589 = vmul.f32 %v213, %v1581
        %v1591 = vsel %vm1072, %v1582, 0
        %v1594 = vsel %vm1072, %v1583, 0
        %v1597 = vsel %vm1072, %v1584, 0
        %v1600 = vsel %vm1072, %v1585, 0
        %v1603 = vsel %vm1072, %v1586, 0
        %v1606 = vsel %vm1072, %v1587, 0
        %v1609 = vsel %vm1072, %v1588, 0
        %v1612 = vsel %vm1072, %v1589, 0
        %1614 = vmatprep.subr.mxu0 0.0
        %1615 = vmatpush1.msra.mxu0 %v1315
        %1616 = vmatprep.subr.mxu0 0.0
        %1617 = vmatpush1.msra.mxu0 %v1316
        %1618 = vmatprep.subr.mxu0 0.0
        %1619 = vmatpush1.msra.mxu0 %v1317
        %1620 = vmatprep.subr.mxu0 0.0
        %1621 = vmatpush1.msra.mxu0 %v1318
        %1622 = vmatprep.subr.mxu0 0.0
        %1623 = vmatpush1.msra.mxu0 %v1319
        %1624 = vmatprep.subr.mxu0 0.0
        %1625 = vmatpush1.msra.mxu0 %v1320
        %1626 = vmatprep.subr.mxu0 0.0
        %1627 = vmatpush1.msra.mxu0 %v1321
        %1628 = vmatprep.subr.mxu0 0.0
        %1629 = vmatpush1.msra.mxu0 %v1322
        %1630 = vmatprep.subr.mxu0 0.0
        %1631 = vmatpush1.msra.mxu0 0.0
        %1632 = vmatprep.subr.mxu0 0.0
        %1633 = vmatpush1.msra.mxu0 0.0
        %1634 = vmatprep.subr.mxu0 0.0
        %1635 = vmatpush1.msra.mxu0 0.0
        %1636 = vmatprep.subr.mxu0 0.0
        %1637 = vmatpush1.msra.mxu0 0.0
        %1638 = vmatprep.subr.mxu0 0.0
        %1639 = vmatpush1.msra.mxu0 0.0
        %1640 = vmatprep.subr.mxu0 0.0
        %1641 = vmatpush1.msra.mxu0 0.0
        %1642 = vmatprep.subr.mxu0 0.0
        %1643 = vmatpush1.msra.mxu0 0.0
        %1644 = vmatprep.subr.mxu0 0.0
        %1645 = vmatpush1.msra.mxu0 0.0
        %1646 = vmatprep.subr.mxu0 0.0
        %1647 = vmatpush1.msra.mxu0 0.0
        %1648 = vmatprep.subr.mxu0 0.0
        %1649 = vmatpush1.msra.mxu0 0.0
        %1650 = vmatprep.subr.mxu0 0.0
        %1651 = vmatpush1.msra.mxu0 0.0
        %1652 = vmatprep.subr.mxu0 0.0
        %1653 = vmatpush1.msra.mxu0 0.0
        %1654 = vmatprep.subr.mxu0 0.0
        %1655 = vmatpush1.msra.mxu0 0.0
        %1656 = vmatprep.subr.mxu0 0.0
        %1657 = vmatpush1.msra.mxu0 0.0
        %1658 = vmatprep.subr.mxu0 0.0
        %1659 = vmatpush1.msra.mxu0 0.0
        %1660 = vmatprep.subr.mxu0 0.0
        %1661 = vmatpush1.msra.mxu0 0.0
        %1662 = vmatprep.subr.mxu0 0.0
        %1663 = vmatpush1.msra.mxu0 0.0
        %1664 = vmatprep.subr.mxu0 0.0
        %1665 = vmatpush1.msra.mxu0 0.0
        %1666 = vmatprep.subr.mxu0 0.0
        %1667 = vmatpush1.msra.mxu0 0.0
        %1668 = vmatprep.subr.mxu0 0.0
        %1669 = vmatpush1.msra.mxu0 0.0
        %1670 = vmatprep.subr.mxu0 0.0
        %1671 = vmatpush1.msra.mxu0 0.0
        %1672 = vmatprep.subr.mxu0 0.0
        %1673 = vmatpush1.msra.mxu0 0.0
        %1674 = vmatprep.subr.mxu0 0.0
        %1675 = vmatpush1.msra.mxu0 0.0
        %1676 = vmatprep.subr.mxu0 0.0
        %1677 = vmatpush1.msra.mxu0 0.0
        %1678 = vmatprep.mubr.f32.mxu0 0.0
        %1679 = vmatmul.mubr.f32.gmra.mrb[0].mxu0 %v1591
        %v1680 = vpop.f32.mrb[0].mxu0
        %v1681 = vadd.f32 0.0, %v1680
        %v1682 = vpop.f32.mrb[0].mxu0
        %1683 = vmatprep.mubr.f32.mxu0 0.0
        %1684 = vmatmul.mubr.f32.gmra.mrb[0].mxu0 %v1594
        %v1685 = vpop.f32.mrb[0].mxu0
        %v1686 = vadd.f32 0.0, %v1685
        %v1687 = vpop.f32.mrb[0].mxu0
        %1688 = vmatprep.mubr.f32.mxu0 0.0
        %1689 = vmatmul.mubr.f32.gmra.mrb[0].mxu0 %v1597
        %v1690 = vpop.f32.mrb[0].mxu0
        %v1691 = vadd.f32 0.0, %v1690
        %v1692 = vpop.f32.mrb[0].mxu0
        %1693 = vmatprep.mubr.f32.mxu0 0.0
        %1694 = vmatmul.mubr.f32.gmra.mrb[0].mxu0 %v1600
        %v1695 = vpop.f32.mrb[0].mxu0
        %v1696 = vadd.f32 0.0, %v1695
        %v1697 = vpop.f32.mrb[0].mxu0
        %1698 = vmatprep.mubr.f32.mxu0 0.0
        %1699 = vmatmul.mubr.f32.gmra.mrb[0].mxu0 %v1603
        %v1700 = vpop.f32.mrb[0].mxu0
        %v1701 = vadd.f32 0.0, %v1700
        %v1702 = vpop.f32.mrb[0].mxu0
        %1703 = vmatprep.mubr.f32.mxu0 0.0
        %1704 = vmatmul.mubr.f32.gmra.mrb[0].mxu0 %v1606
        %v1705 = vpop.f32.mrb[0].mxu0
        %v1706 = vadd.f32 0.0, %v1705
        %v1707 = vpop.f32.mrb[0].mxu0
        %1708 = vmatprep.mubr.f32.mxu0 0.0
        %1709 = vmatmul.mubr.f32.gmra.mrb[0].mxu0 %v1609
        %v1710 = vpop.f32.mrb[0].mxu0
        %v1711 = vadd.f32 0.0, %v1710
        %v1712 = vpop.f32.mrb[0].mxu0
        %1713 = vmatprep.mubr.f32.mxu0 0.0
        %1714 = vmatmul.mubr.f32.gmra.mrb[0].mxu0 %v1612
        %v1715 = vpop.f32.mrb[0].mxu0
        %v1716 = vadd.f32 0.0, %v1715
        %v1717 = vpop.f32.mrb[0].mxu0
        %1718 = vdwg.mxu0
        %v1719 = vmul.f32 %v1315, 0.3
        %v1720 = vmul.f32 %v1316, 0.3
        %v1721 = vmul.f32 %v1317, 0.3
        %v1722 = vmul.f32 %v1318, 0.3
        %v1723 = vmul.f32 %v1319, 0.3
        %v1724 = vmul.f32 %v1320, 0.3
        %v1725 = vmul.f32 %v1321, 0.3
        %v1726 = vmul.f32 %v1322, 0.3
        %v1727 = vmul.f32 %v830, %v1681
        %v1728 = vmul.f32 %v835, %v1686
        %v1729 = vmul.f32 %v840, %v1691
        %v1730 = vmul.f32 %v845, %v1696
        %v1731 = vmul.f32 %v850, %v1701
        %v1732 = vmul.f32 %v855, %v1706
        %v1733 = vmul.f32 %v860, %v1711
        %v1734 = vmul.f32 %v865, %v1716
        %v1735 = vadd.f32 %v1719, %v1727
        %v1736 = vadd.f32 %v1720, %v1728
        %v1737 = vadd.f32 %v1721, %v1729
        %v1738 = vadd.f32 %v1722, %v1730
        %v1739 = vadd.f32 %v1723, %v1731
        %v1740 = vadd.f32 %v1724, %v1732
        %v1741 = vadd.f32 %v1725, %v1733
        %v1742 = vadd.f32 %v1726, %v1734
        %v1743 = vmax.f32 %v1735, 0.0
        %v1744 = vmax.f32 %v1736, 0.0
        %v1745 = vmax.f32 %v1737, 0.0
        %v1746 = vmax.f32 %v1738, 0.0
        %v1747 = vmax.f32 %v1739, 0.0
        %v1748 = vmax.f32 %v1740, 0.0
        %v1749 = vmax.f32 %v1741, 0.0
        %v1750 = vmax.f32 %v1742, 0.0
        %v1752 = vsel %vm1072, %v218, 0
        %1754 = vmatprep.subr.mxu0 0.0
        %1755 = vmatpush1.msra.mxu0 %v1743
        %1756 = vmatprep.subr.mxu0 0.0
        %1757 = vmatpush1.msra.mxu0 %v1744
        %1758 = vmatprep.subr.mxu0 0.0
        %1759 = vmatpush1.msra.mxu0 %v1745
        %1760 = vmatprep.subr.mxu0 0.0
        %1761 = vmatpush1.msra.mxu0 %v1746
        %1762 = vmatprep.subr.mxu0 0.0
        %1763 = vmatpush1.msra.mxu0 %v1747
        %1764 = vmatprep.subr.mxu0 0.0
        %1765 = vmatpush1.msra.mxu0 %v1748
        %1766 = vmatprep.subr.mxu0 0.0
        %1767 = vmatpush1.msra.mxu0 %v1749
        %1768 = vmatprep.subr.mxu0 0.0
        %1769 = vmatpush1.msra.mxu0 %v1750
        %1770 = vmatprep.subr.mxu0 0.0
        %1771 = vmatpush1.msra.mxu0 0.0
        %1772 = vmatprep.subr.mxu0 0.0
        %1773 = vmatpush1.msra.mxu0 0.0
        %1774 = vmatprep.subr.mxu0 0.0
        %1775 = vmatpush1.msra.mxu0 0.0
        %1776 = vmatprep.subr.mxu0 0.0
        %1777 = vmatpush1.msra.mxu0 0.0
        %1778 = vmatprep.subr.mxu0 0.0
        %1779 = vmatpush1.msra.mxu0 0.0
        %1780 = vmatprep.subr.mxu0 0.0
        %1781 = vmatpush1.msra.mxu0 0.0
        %1782 = vmatprep.subr.mxu0 0.0
        %1783 = vmatpush1.msra.mxu0 0.0
        %1784 = vmatprep.subr.mxu0 0.0
        %1785 = vmatpush1.msra.mxu0 0.0
        %1786 = vmatprep.subr.mxu0 0.0
        %1787 = vmatpush1.msra.mxu0 0.0
        %1788 = vmatprep.subr.mxu0 0.0
        %1789 = vmatpush1.msra.mxu0 0.0
        %1790 = vmatprep.subr.mxu0 0.0
        %1791 = vmatpush1.msra.mxu0 0.0
        %1792 = vmatprep.subr.mxu0 0.0
        %1793 = vmatpush1.msra.mxu0 0.0
        %1794 = vmatprep.subr.mxu0 0.0
        %1795 = vmatpush1.msra.mxu0 0.0
        %1796 = vmatprep.subr.mxu0 0.0
        %1797 = vmatpush1.msra.mxu0 0.0
        %1798 = vmatprep.subr.mxu0 0.0
        %1799 = vmatpush1.msra.mxu0 0.0
        %1800 = vmatprep.subr.mxu0 0.0
        %1801 = vmatpush1.msra.mxu0 0.0
        %1802 = vmatprep.subr.mxu0 0.0
        %1803 = vmatpush1.msra.mxu0 0.0
        %1804 = vmatprep.subr.mxu0 0.0
        %1805 = vmatpush1.msra.mxu0 0.0
        %1806 = vmatprep.subr.mxu0 0.0
        %1807 = vmatpush1.msra.mxu0 0.0
        %1808 = vmatprep.subr.mxu0 0.0
        %1809 = vmatpush1.msra.mxu0 0.0
        %1810 = vmatprep.subr.mxu0 0.0
        %1811 = vmatpush1.msra.mxu0 0.0
        %1812 = vmatprep.subr.mxu0 0.0
        %1813 = vmatpush1.msra.mxu0 0.0
        %1814 = vmatprep.subr.mxu0 0.0
        %1815 = vmatpush1.msra.mxu0 0.0
        %1816 = vmatprep.subr.mxu0 0.0
        %1817 = vmatpush1.msra.mxu0 0.0
        %1818 = vmatprep.mubr.f32.mxu0 0.0
        %1819 = vmatmul.mubr.f32.gmra.mrb[0].mxu0 %v1752
        %v1820 = vpop.f32.mrb[0].mxu0
        %v1821 = vadd.f32 0.0, %v1820
        %v1822 = vpop.f32.mrb[0].mxu0
        %1823 = vdwg.mxu0
        %1824 = vst.msk [vmem:[%s188] sm:$0xff] %vm409, %v1821
        %s1825 = sand.u32 %s96, 1
        %s1826 = scalar_lea.sflag [#allocation4], %s1825
        %s1827 = sand.u32 %s96, 1
        %s1828 = smul.addr %s1827, 8
        %s1829 = scalar_lea.vmem [#allocation5], %s1828
        // Predicated region
        $region37: #{tpu_custom_call.1} parent=31 // pred_check
          %p1830 = pneg %p106
        $region38: #{tpu_custom_call.1} parent=31 // pred_check_branch
          %1832 = sbr.rel (%p1830) target = $region40
        $region39: #{tpu_custom_call.1} parent=31 // pred_region
          %s1834 = ssub.s32 128, 128
          %1835 = vsyncadd %s1826, %s1834
          %s1836 = smul.addr %s20, 128
          %s1837 = scalar_lea.hbm %s3, %s1836
          %s1839 = sshll.u32 %s1829, 4
          %s1840 = int_to_ptr.vmem [resolvable:$true] %s1839
          %1842 = dma.vmem_to_hbm [thread:$0]  %s1840, 128, %s1837, %s1826
        $region40: #{tpu_custom_call.1} parent=31 // pred_fallthru
          _
      $region32: #{tpu_custom_call.1} parent=5 // pred_fallthru
        _
      %p1843 = scmp.le.s32.totalorder 2, %s15
      // Predicated region
      $region41: #{tpu_custom_call.1} parent=5 // pred_check
        %p1844 = pneg %p1843
      $region42: #{tpu_custom_call.1} parent=5 // pred_check_branch
        %1846 = sbr.rel (%p1844) target = $region44
      $region43: #{tpu_custom_call.1} parent=5 // pred_region
        %s1847 = ssub.s32 %s15, 2
        // Predicated region
        $region45: #{tpu_custom_call.1} parent=43 // pred_check
          %p1848 = pneg %p112
        $region46: #{tpu_custom_call.1} parent=43 // pred_check_branch
          %1850 = sbr.rel (%p1848) target = $region48
        $region47: #{tpu_custom_call.1} parent=43 // pred_region
          %s1851 = sand.u32 %s97, 1
          %s1852 = scalar_lea.sflag [#allocation4], %s1851
          %s1853 = sand.u32 %s97, 1
          %s1854 = smul.addr %s1853, 8
          %s1855 = scalar_lea.vmem [#allocation5], %s1854
          %1856 = dma.done %s1852, 128
        $region48: #{tpu_custom_call.1} parent=43 // pred_fallthru
          _
      $region44: #{tpu_custom_call.1} parent=5 // pred_fallthru
        _
    $region6: #{tpu_custom_call.1} parent=1 // loop_footer
      %s19 = sadd.s32 1, %s15
    $region7: #{tpu_custom_call.1} parent=1 // loop_footer_branch
      %14 = sbr.rel target = $region3
    $region8: #{tpu_custom_call.1} parent=1 // loop_exit
      _
    %1857 = vsyncpa [#allocation3], 1
    %s1858 = scalar_lea.sflag [#allocation3], 1
    %1859 = vsyncpa %s1858, 1
    %1860 = vsyncpa [#allocation4], 1
    %s1861 = scalar_lea.sflag [#allocation4], 1
    %1862 = vsyncpa %s1861, 1

</llo_original>
